<compile_context>
chip_gen: v7x
topology: tpu7x:2x2x1
jax: 0.10.0
libtpu: 0.0.40
codegen_flags: <defaults>
</compile_context>

<pallas_src>
import functools

import numpy as np
import jax
import jax.numpy as jnp
from jax import lax
from jax.experimental import pallas as pl
from jax.experimental.pallas import tpu as pltpu

EPS = 1e-5


# ----------------------------------------------------------------------------
# Fused kernel: concat + (conv3x3 -> BN -> ReLU) x 2, replicate padding of the
# intermediate done in VMEM.
# ----------------------------------------------------------------------------
def _up_double_conv_kernel(x2_ref, x1_ref, masks_ref, w1_ref, g1_ref, be1_ref,
                           w2_ref, g2_ref, be2_ref, o_ref,
                           col_ref, h_ref, *, dims, eps):
    N, H, W, C2, C1 = dims
    P, Q = H + 2, W + 2
    L = N * P * Q                  # flattened padded spatial extent (lane axis)
    G = Q + 1                      # guard-column offset in the lane-padded inputs
    M = N * H * W                  # number of valid output pixels (BN count)
    Cmid = w1_ref.shape[0]
    K1 = 9 * (C2 + C1)
    K2 = 9 * Cmid
    inv_m = jnp.float32(1.0 / M)

    mk = masks_ref[...]            # (5, L) f32 masks, precomputed host-side
    valid = mk[0:1, :] > 0.5       # true conv-output positions (exclude halo)
    m_l = mk[1:2, :] > 0.5         # left / right / top / bottom halo columns
    m_r = mk[2:3, :] > 0.5
    m_t = mk[3:4, :] > 0.5
    m_b = mk[4:5, :] > 0.5

    # ---- conv1: im2col = row-stack of 9 lane-dense shifted slabs per input.
    # The channel concat [x2, x1] is fused here: x2's rows come first, then
    # x1's (the weight rows were permuted to match in the wrapper).
    row = 0
    for ref, c_g in ((x2_ref, C2), (x1_ref, C1)):
        for ky in range(3):
            for kx in range(3):
                off = G + (ky - 1) * Q + (kx - 1)          # static lane offset
                col_ref[row:row + c_g, :] = ref[:, off:off + L]
                row += c_g
    acc1 = jnp.dot(w1_ref[...], col_ref[0:K1, :],
                   preferred_element_type=jnp.float32)     # (Cmid, L) f32

    # ---- BN1 (training-mode stats over the M valid columns) + ReLU ---------
    mean1 = jnp.sum(jnp.where(valid, acc1, 0.0), axis=1, keepdims=True) * inv_m
    d1 = acc1 - mean1
    var1 = jnp.sum(jnp.where(valid, d1 * d1, 0.0), axis=1, keepdims=True) * inv_m
    h = jnp.maximum(d1 * (g1_ref[...] * lax.rsqrt(var1 + eps)) + be1_ref[...],
                    0.0)                                   # (Cmid, L)

    # ---- replicate-pad the intermediate entirely in VMEM:
    # halo columns take the value of their interior neighbour via lane shifts
    # + masked selects (left/right first, then top/bottom -> corners correct).
    h = jnp.where(m_l, jnp.roll(h, -1, axis=1), h)
    h = jnp.where(m_r, jnp.roll(h, 1, axis=1), h)
    h = jnp.where(m_t, jnp.roll(h, -Q, axis=1), h)
    h = jnp.where(m_b, jnp.roll(h, Q, axis=1), h)
    h_ref[...] = jnp.zeros_like(h_ref)                     # zero guard columns
    h_ref[:, G:G + L] = h

    # ---- conv2: same single-matmul structure, reusing the col scratch ------
    for ky in range(3):
        for kx in range(3):
            off = G + (ky - 1) * Q + (kx - 1)
            t = ky * 3 + kx
            col_ref[t * Cmid:(t + 1) * Cmid, :] = h_ref[:, off:off + L]
    acc2 = jnp.dot(w2_ref[...], col_ref[0:K2, :],
                   preferred_element_type=jnp.float32)     # (Cout, L) f32

    mean2 = jnp.sum(jnp.where(valid, acc2, 0.0), axis=1, keepdims=True) * inv_m
    d2 = acc2 - mean2
    var2 = jnp.sum(jnp.where(valid, d2 * d2, 0.0), axis=1, keepdims=True) * inv_m
    # lane-dense store, already in (Cout, spatial) orientation: no transpose
    o_ref[...] = jnp.maximum(
        d2 * (g2_ref[...] * lax.rsqrt(var2 + eps)) + be2_ref[...], 0.0)


# ----------------------------------------------------------------------------
# Wrapper-side glue (all cheap host/XLA ops on small arrays)
# ----------------------------------------------------------------------------
def bilinear_upsample_2x_align_corners(x):
    """2x bilinear upsample, align_corners=True, NCHW."""
    # TODO(synk): fuse this gather-based upsample (and the diffX/diffY pad)
    # into the Pallas kernel to remove the remaining inter-op HBM round trip.
    N, C, H, W = x.shape
    Ho, Wo = 2 * H, 2 * W

    def coords(n_in, n_out):
        pos = jnp.arange(n_out, dtype=jnp.float32) * (n_in - 1) / (n_out - 1)
        i0 = jnp.floor(pos).astype(jnp.int32)
        i1 = jnp.minimum(i0 + 1, n_in - 1)
        return i0, i1, pos - i0.astype(jnp.float32)

    y0, y1, wy = coords(H, Ho)
    x0, x1, wx = coords(W, Wo)
    xh = (x[:, :, y0, :] * (1.0 - wy)[None, None, :, None]
          + x[:, :, y1, :] * wy[None, None, :, None])
    return xh[:, :, :, x0] * (1.0 - wx) + xh[:, :, :, x1] * wx


def _flatten_edge_padded(x_nchw, G, Lg):
    """NCHW -> replicate-padded, channels-leading, flat (C, Lg) with zero guards."""
    C = x_nchw.shape[1]
    xp = jnp.pad(x_nchw, ((0, 0), (0, 0), (1, 1), (1, 1)), mode="edge")
    xf = jnp.transpose(xp, (1, 0, 2, 3)).reshape(C, -1)    # (C, N*(H+2)*(W+2))
    L = xf.shape[1]
    return jnp.pad(xf, ((0, 0), (G, Lg - G - L)))


def _make_masks(N, H, W):
    """(5, L) f32: [valid, left-halo, right-halo, top-halo, bottom-halo]."""
    P, Q = H + 2, W + 2
    yy, xx = np.meshgrid(np.arange(P), np.arange(Q), indexing="ij")
    valid = (yy >= 1) & (yy <= H) & (xx >= 1) & (xx <= W)
    m = np.stack([valid, xx == 0, xx == Q - 1, yy == 0, yy == P - 1])
    m = np.broadcast_to(m[:, None].astype(np.float32), (5, N, P, Q))
    return jnp.asarray(m.reshape(5, N * P * Q))


def _flat_w(w):
    """(3,3,Cg,Co) HWIO -> (Co, 9*Cg), columns ordered (ky, kx, c)."""
    return jnp.transpose(w, (3, 0, 1, 2)).reshape(w.shape[3], -1)


# ----------------------------------------------------------------------------
# Up module: parameters + forward
# ----------------------------------------------------------------------------
def init_up_params(key, in_channels, out_channels):
    """DoubleConv(in_channels, out_channels) parameters, HWIO weights."""
    k = jax.random.split(key, 8)
    return {
        "w1": 0.1 * jax.random.normal(k[0], (3, 3, in_channels, out_channels),
                                      jnp.float32),
        "b1": 0.1 * jax.random.normal(k[1], (out_channels,), jnp.float32),
        "g1": 1.0 + 0.1 * jax.random.normal(k[2], (out_channels,), jnp.float32),
        "beta1": 0.1 * jax.random.normal(k[3], (out_channels,), jnp.float32),
        "w2": 0.1 * jax.random.normal(k[4], (3, 3, out_channels, out_channels),
                                      jnp.float32),
        "b2": 0.1 * jax.random.normal(k[5], (out_channels,), jnp.float32),
        "g2": 1.0 + 0.1 * jax.random.normal(k[6], (out_channels,), jnp.float32),
        "beta2": 0.1 * jax.random.normal(k[7], (out_channels,), jnp.float32),
    }


def up_forward(params, x1_nchw, x2_nchw):
    """Matches Up.forward(x1, x2) with bilinear=True (NCHW in / NCHW out)."""
    # 1) upsample x1 by 2 (bilinear, align_corners=True), zero-pad to x2's size
    x1 = bilinear_upsample_2x_align_corners(x1_nchw)
    dY = x2_nchw.shape[2] - x1.shape[2]
    dX = x2_nchw.shape[3] - x1.shape[3]
    if dY or dX:
        x1 = jnp.pad(x1, ((0, 0), (0, 0),
                          (dY // 2, dY - dY // 2), (dX // 2, dX - dX // 2)))

    N, C2, H, W = x2_nchw.shape
    C1 = x1.shape[1]
    Cin = C2 + C1
    Cmid = params["w1"].shape[3]
    Cout = params["w2"].shape[3]
    P, Q = H + 2, W + 2
    L = N * P * Q
    G = Q + 1                                        # guard columns for tap shifts
    Lg = ((L + 2 * G + 127) // 128) * 128            # lane-padded slab width

    # channels-leading flat slabs (NCHW consumed directly; only a major-dim
    # (N,C) swap + edge pad here, no NHWC minor-dim transpose)
    x2f = _flatten_edge_padded(x2_nchw, G, Lg)       # (C2, Lg)
    x1f = _flatten_edge_padded(x1, G, Lg)            # (C1, Lg)
    masks = _make_masks(N, H, W)                     # (5, L)

    # weight matrices in the (Cout, 9*Cin) orientation; rows for the fused
    # concat [x2, x1] are permuted here (host-side, free)
    w1m = jnp.concatenate([_flat_w(params["w1"][:, :, :C2, :]),
                           _flat_w(params["w1"][:, :, C2:, :])], axis=1)
    w2m = _flat_w(params["w2"])
    # conv biases are intentionally NOT passed: training-mode BN cancels them.

    kernel = functools.partial(_up_double_conv_kernel,
                               dims=(N, H, W, C2, C1), eps=EPS)
    vmem = pl.BlockSpec(memory_space=pltpu.MemorySpace.VMEM)
    out_flat = pl.pallas_call(
        kernel,
        out_shape=jax.ShapeDtypeStruct((Cout, L), jnp.float32),
        in_specs=[vmem] * 9,
        out_specs=vmem,
        scratch_shapes=[
            pltpu.VMEM((9 * Cin, L), jnp.float32),   # shared im2col scratch
            pltpu.VMEM((Cmid, Lg), jnp.float32),     # padded intermediate (VMEM only)
        ],
        compiler_params=pltpu.CompilerParams(vmem_limit_bytes=64 * 1024 * 1024),
    )(x2f, x1f, masks, w1m,
      params["g1"].reshape(Cmid, 1), params["beta1"].reshape(Cmid, 1),
      w2m,
      params["g2"].reshape(Cout, 1), params["beta2"].reshape(Cout, 1))

    # (Cout, L) padded-grid slab -> slice the valid pixels -> NCHW
    out = out_flat.reshape(Cout, N, P, Q)[:, :, 1:H + 1, 1:W + 1]
    return jnp.transpose(out, (1, 0, 2, 3))


# ----------------------------------------------------------------------------
# Pure-JAX reference (includes the conv biases; confirms the BN cancellation)
# ----------------------------------------------------------------------------
def _reference_up_forward(params, x1_nchw, x2_nchw):
    x1 = bilinear_upsample_2x_align_corners(x1_nchw)
    dY = x2_nchw.shape[2] - x1.shape[2]
    dX = x2_nchw.shape[3] - x1.shape[3]
    x1 = jnp.pad(x1, ((0, 0), (0, 0),
                      (dY // 2, dY - dY // 2), (dX // 2, dX - dX // 2)))
    x = jnp.concatenate([x2_nchw, x1], axis=1)

    def conv_bn_relu(x, w, b, g, beta):
        xp = jnp.pad(x, ((0, 0), (0, 0), (1, 1), (1, 1)), mode="edge")
        y = lax.conv_general_dilated(
            xp, w, window_strides=(1, 1), padding="VALID",
            dimension_numbers=("NCHW", "HWIO", "NCHW"))
        y = y + b[None, :, None, None]
        mean = jnp.mean(y, axis=(0, 2, 3), keepdims=True)
        var = jnp.mean((y - mean) ** 2, axis=(0, 2, 3), keepdims=True)
        y = ((y - mean) * lax.rsqrt(var + EPS) * g[None, :, None, None]
             + beta[None, :, None, None])
        return jnp.maximum(y, 0.0)

    h = conv_bn_relu(x, params["w1"], params["b1"], params["g1"], params["beta1"])
    h = conv_bn_relu(h, params["w2"], params["b2"], params["g2"], params["beta2"])
    return h


if __name__ == "__main__":
    key = jax.random.PRNGKey(0)
    k_x1, k_x2, k_p = jax.random.split(key, 3)

    # Up(in_channels=6, out_channels=4):
    #   x1: (N, 2, 8, 8)   -> upsampled to (N, 2, 16, 16)
    #   x2: (N, 4, 16, 16)
    #   concat -> 6 channels = in_channels
    N, C1, C2, out_ch = 2, 2, 4, 4
    in_ch = C1 + C2

    x1 = jax.random.normal(k_x1, (N, C1, 8, 8), jnp.float32)
    x2 = jax.random.normal(k_x2, (N, C2, 16, 16), jnp.float32)
    params = init_up_params(k_p, in_ch, out_ch)

    out = jax.block_until_ready(up_forward(params, x1, x2))
    assert out.shape == (N, out_ch, 16, 16), out.shape
    assert bool(jnp.all(jnp.isfinite(out)))

    ref = jax.block_until_ready(_reference_up_forward(params, x1, x2))
    max_err = float(jnp.max(jnp.abs(out - ref)))
    assert max_err < 2e-3, f"max abs error vs reference: {max_err}"

    print("KERNEL_OK")
</pallas_src>

<mosaic_0001>
module attributes {stable_mosaic.version = 11 : i64} {
  func.func @_up_double_conv_kernel(%arg0: memref<4x768xf32, #tpu.memory_space<vmem>>, %arg1: memref<2x768xf32, #tpu.memory_space<vmem>>, %arg2: memref<5x648xf32, #tpu.memory_space<vmem>>, %arg3: memref<4x54xf32, #tpu.memory_space<vmem>>, %arg4: memref<4x1xf32, #tpu.memory_space<vmem>>, %arg5: memref<4x1xf32, #tpu.memory_space<vmem>>, %arg6: memref<4x36xf32, #tpu.memory_space<vmem>>, %arg7: memref<4x1xf32, #tpu.memory_space<vmem>>, %arg8: memref<4x1xf32, #tpu.memory_space<vmem>>, %arg9: memref<4x648xf32, #tpu.memory_space<vmem>>, %arg10: memref<54x648xf32, #tpu.memory_space<vmem>>, %arg11: memref<4x768xf32, #tpu.memory_space<vmem>>) attributes {dimension_semantics = [], scalar_prefetch = 0 : i64, scratch_operands = 2 : i64, tpu.core_type = #tpu.core_type<tc>} {
    %c0 = arith.constant 0 : index
    %c0_0 = arith.constant 0 : index
    %0 = vector.load %arg2[%c0, %c0_0] : memref<5x648xf32, #tpu.memory_space<vmem>>, vector<5x648xf32>
    %1 = vector.extract_strided_slice %0 {offsets = [0, 0], sizes = [1, 648], strides = [1, 1]} : vector<5x648xf32> to vector<1x648xf32>
    %cst = arith.constant 5.000000e-01 : f32
    %2 = vector.broadcast %cst : f32 to vector<1x648xf32>
    %3 = arith.cmpf ogt, %1, %2 : vector<1x648xf32>
    %4 = vector.extract_strided_slice %0 {offsets = [1, 0], sizes = [1, 648], strides = [1, 1]} : vector<5x648xf32> to vector<1x648xf32>
    %cst_1 = arith.constant 5.000000e-01 : f32
    %5 = vector.broadcast %cst_1 : f32 to vector<1x648xf32>
    %6 = arith.cmpf ogt, %4, %5 : vector<1x648xf32>
    %7 = vector.extract_strided_slice %0 {offsets = [2, 0], sizes = [1, 648], strides = [1, 1]} : vector<5x648xf32> to vector<1x648xf32>
    %cst_2 = arith.constant 5.000000e-01 : f32
    %8 = vector.broadcast %cst_2 : f32 to vector<1x648xf32>
    %9 = arith.cmpf ogt, %7, %8 : vector<1x648xf32>
    %10 = vector.extract_strided_slice %0 {offsets = [3, 0], sizes = [1, 648], strides = [1, 1]} : vector<5x648xf32> to vector<1x648xf32>
    %cst_3 = arith.constant 5.000000e-01 : f32
    %11 = vector.broadcast %cst_3 : f32 to vector<1x648xf32>
    %12 = arith.cmpf ogt, %10, %11 : vector<1x648xf32>
    %13 = vector.extract_strided_slice %0 {offsets = [4, 0], sizes = [1, 648], strides = [1, 1]} : vector<5x648xf32> to vector<1x648xf32>
    %cst_4 = arith.constant 5.000000e-01 : f32
    %14 = vector.broadcast %cst_4 : f32 to vector<1x648xf32>
    %15 = arith.cmpf ogt, %13, %14 : vector<1x648xf32>
    %c0_5 = arith.constant 0 : index
    %c0_6 = arith.constant 0 : index
    %16 = vector.load %arg0[%c0_5, %c0_6] : memref<4x768xf32, #tpu.memory_space<vmem>>, vector<4x648xf32>
    %c0_7 = arith.constant 0 : index
    %c0_8 = arith.constant 0 : index
    %17 = vector.load %arg10[%c0_7, %c0_8] : memref<54x648xf32, #tpu.memory_space<vmem>>, vector<4x648xf32>
    tpu.vector_store %arg10[%c0_7, %c0_8], %16 {strides = array<i32>} : memref<54x648xf32, #tpu.memory_space<vmem>>, vector<4x648xf32>,
    %c0_9 = arith.constant 0 : index
    %c1 = arith.constant 1 : index
    %18 = vector.load %arg0[%c0_9, %c1] : memref<4x768xf32, #tpu.memory_space<vmem>>, vector<4x648xf32>
    %c4 = arith.constant 4 : index
    %c0_10 = arith.constant 0 : index
    %19 = vector.load %arg10[%c4, %c0_10] : memref<54x648xf32, #tpu.memory_space<vmem>>, vector<4x648xf32>
    tpu.vector_store %arg10[%c4, %c0_10], %18 {strides = array<i32>} : memref<54x648xf32, #tpu.memory_space<vmem>>, vector<4x648xf32>,
    %c0_11 = arith.constant 0 : index
    %c2 = arith.constant 2 : index
    %20 = vector.load %arg0[%c0_11, %c2] : memref<4x768xf32, #tpu.memory_space<vmem>>, vector<4x648xf32>
    %c8 = arith.constant 8 : index
    %c0_12 = arith.constant 0 : index
    %21 = vector.load %arg10[%c8, %c0_12] : memref<54x648xf32, #tpu.memory_space<vmem>>, vector<4x648xf32>
    tpu.vector_store %arg10[%c8, %c0_12], %20 {strides = array<i32>} : memref<54x648xf32, #tpu.memory_space<vmem>>, vector<4x648xf32>,
    %c0_13 = arith.constant 0 : index
    %c18 = arith.constant 18 : index
    %22 = vector.load %arg0[%c0_13, %c18] : memref<4x768xf32, #tpu.memory_space<vmem>>, vector<4x648xf32>
    %c12 = arith.constant 12 : index
    %c0_14 = arith.constant 0 : index
    %23 = vector.load %arg10[%c12, %c0_14] : memref<54x648xf32, #tpu.memory_space<vmem>>, vector<4x648xf32>
    tpu.vector_store %arg10[%c12, %c0_14], %22 {strides = array<i32>} : memref<54x648xf32, #tpu.memory_space<vmem>>, vector<4x648xf32>,
    %c0_15 = arith.constant 0 : index
    %c19 = arith.constant 19 : index
    %24 = vector.load %arg0[%c0_15, %c19] : memref<4x768xf32, #tpu.memory_space<vmem>>, vector<4x648xf32>
    %c16 = arith.constant 16 : index
    %c0_16 = arith.constant 0 : index
    %25 = vector.load %arg10[%c16, %c0_16] : memref<54x648xf32, #tpu.memory_space<vmem>>, vector<4x648xf32>
    tpu.vector_store %arg10[%c16, %c0_16], %24 {strides = array<i32>} : memref<54x648xf32, #tpu.memory_space<vmem>>, vector<4x648xf32>,
    %c0_17 = arith.constant 0 : index
    %c20 = arith.constant 20 : index
    %26 = vector.load %arg0[%c0_17, %c20] : memref<4x768xf32, #tpu.memory_space<vmem>>, vector<4x648xf32>
    %c20_18 = arith.constant 20 : index
    %c0_19 = arith.constant 0 : index
    %27 = vector.load %arg10[%c20_18, %c0_19] : memref<54x648xf32, #tpu.memory_space<vmem>>, vector<4x648xf32>
    tpu.vector_store %arg10[%c20_18, %c0_19], %26 {strides = array<i32>} : memref<54x648xf32, #tpu.memory_space<vmem>>, vector<4x648xf32>,
    %c0_20 = arith.constant 0 : index
    %c36 = arith.constant 36 : index
    %28 = vector.load %arg0[%c0_20, %c36] : memref<4x768xf32, #tpu.memory_space<vmem>>, vector<4x648xf32>
    %c24 = arith.constant 24 : index
    %c0_21 = arith.constant 0 : index
    %29 = vector.load %arg10[%c24, %c0_21] : memref<54x648xf32, #tpu.memory_space<vmem>>, vector<4x648xf32>
    tpu.vector_store %arg10[%c24, %c0_21], %28 {strides = array<i32>} : memref<54x648xf32, #tpu.memory_space<vmem>>, vector<4x648xf32>,
    %c0_22 = arith.constant 0 : index
    %c37 = arith.constant 37 : index
    %30 = vector.load %arg0[%c0_22, %c37] : memref<4x768xf32, #tpu.memory_space<vmem>>, vector<4x648xf32>
    %c28 = arith.constant 28 : index
    %c0_23 = arith.constant 0 : index
    %31 = vector.load %arg10[%c28, %c0_23] : memref<54x648xf32, #tpu.memory_space<vmem>>, vector<4x648xf32>
    tpu.vector_store %arg10[%c28, %c0_23], %30 {strides = array<i32>} : memref<54x648xf32, #tpu.memory_space<vmem>>, vector<4x648xf32>,
    %c0_24 = arith.constant 0 : index
    %c38 = arith.constant 38 : index
    %32 = vector.load %arg0[%c0_24, %c38] : memref<4x768xf32, #tpu.memory_space<vmem>>, vector<4x648xf32>
    %c32 = arith.constant 32 : index
    %c0_25 = arith.constant 0 : index
    %33 = vector.load %arg10[%c32, %c0_25] : memref<54x648xf32, #tpu.memory_space<vmem>>, vector<4x648xf32>
    tpu.vector_store %arg10[%c32, %c0_25], %32 {strides = array<i32>} : memref<54x648xf32, #tpu.memory_space<vmem>>, vector<4x648xf32>,
    %c0_26 = arith.constant 0 : index
    %c0_27 = arith.constant 0 : index
    %34 = vector.load %arg1[%c0_26, %c0_27] : memref<2x768xf32, #tpu.memory_space<vmem>>, vector<2x648xf32>
    %c36_28 = arith.constant 36 : index
    %c0_29 = arith.constant 0 : index
    %35 = vector.load %arg10[%c36_28, %c0_29] : memref<54x648xf32, #tpu.memory_space<vmem>>, vector<2x648xf32>
    tpu.vector_store %arg10[%c36_28, %c0_29], %34 {strides = array<i32>} : memref<54x648xf32, #tpu.memory_space<vmem>>, vector<2x648xf32>,
    %c0_30 = arith.constant 0 : index
    %c1_31 = arith.constant 1 : index
    %36 = vector.load %arg1[%c0_30, %c1_31] : memref<2x768xf32, #tpu.memory_space<vmem>>, vector<2x648xf32>
    %c38_32 = arith.constant 38 : index
    %c0_33 = arith.constant 0 : index
    %37 = vector.load %arg10[%c38_32, %c0_33] : memref<54x648xf32, #tpu.memory_space<vmem>>, vector<2x648xf32>
    tpu.vector_store %arg10[%c38_32, %c0_33], %36 {strides = array<i32>} : memref<54x648xf32, #tpu.memory_space<vmem>>, vector<2x648xf32>,
    %c0_34 = arith.constant 0 : index
    %c2_35 = arith.constant 2 : index
    %38 = vector.load %arg1[%c0_34, %c2_35] : memref<2x768xf32, #tpu.memory_space<vmem>>, vector<2x648xf32>
    %c40 = arith.constant 40 : index
    %c0_36 = arith.constant 0 : index
    %39 = vector.load %arg10[%c40, %c0_36] : memref<54x648xf32, #tpu.memory_space<vmem>>, vector<2x648xf32>
    tpu.vector_store %arg10[%c40, %c0_36], %38 {strides = array<i32>} : memref<54x648xf32, #tpu.memory_space<vmem>>, vector<2x648xf32>,
    %c0_37 = arith.constant 0 : index
    %c18_38 = arith.constant 18 : index
    %40 = vector.load %arg1[%c0_37, %c18_38] : memref<2x768xf32, #tpu.memory_space<vmem>>, vector<2x648xf32>
    %c42 = arith.constant 42 : index
    %c0_39 = arith.constant 0 : index
    %41 = vector.load %arg10[%c42, %c0_39] : memref<54x648xf32, #tpu.memory_space<vmem>>, vector<2x648xf32>
    tpu.vector_store %arg10[%c42, %c0_39], %40 {strides = array<i32>} : memref<54x648xf32, #tpu.memory_space<vmem>>, vector<2x648xf32>,
    %c0_40 = arith.constant 0 : index
    %c19_41 = arith.constant 19 : index
    %42 = vector.load %arg1[%c0_40, %c19_41] : memref<2x768xf32, #tpu.memory_space<vmem>>, vector<2x648xf32>
    %c44 = arith.constant 44 : index
    %c0_42 = arith.constant 0 : index
    %43 = vector.load %arg10[%c44, %c0_42] : memref<54x648xf32, #tpu.memory_space<vmem>>, vector<2x648xf32>
    tpu.vector_store %arg10[%c44, %c0_42], %42 {strides = array<i32>} : memref<54x648xf32, #tpu.memory_space<vmem>>, vector<2x648xf32>,
    %c0_43 = arith.constant 0 : index
    %c20_44 = arith.constant 20 : index
    %44 = vector.load %arg1[%c0_43, %c20_44] : memref<2x768xf32, #tpu.memory_space<vmem>>, vector<2x648xf32>
    %c46 = arith.constant 46 : index
    %c0_45 = arith.constant 0 : index
    %45 = vector.load %arg10[%c46, %c0_45] : memref<54x648xf32, #tpu.memory_space<vmem>>, vector<2x648xf32>
    tpu.vector_store %arg10[%c46, %c0_45], %44 {strides = array<i32>} : memref<54x648xf32, #tpu.memory_space<vmem>>, vector<2x648xf32>,
    %c0_46 = arith.constant 0 : index
    %c36_47 = arith.constant 36 : index
    %46 = vector.load %arg1[%c0_46, %c36_47] : memref<2x768xf32, #tpu.memory_space<vmem>>, vector<2x648xf32>
    %c48 = arith.constant 48 : index
    %c0_48 = arith.constant 0 : index
    %47 = vector.load %arg10[%c48, %c0_48] : memref<54x648xf32, #tpu.memory_space<vmem>>, vector<2x648xf32>
    tpu.vector_store %arg10[%c48, %c0_48], %46 {strides = array<i32>} : memref<54x648xf32, #tpu.memory_space<vmem>>, vector<2x648xf32>,
    %c0_49 = arith.constant 0 : index
    %c37_50 = arith.constant 37 : index
    %48 = vector.load %arg1[%c0_49, %c37_50] : memref<2x768xf32, #tpu.memory_space<vmem>>, vector<2x648xf32>
    %c50 = arith.constant 50 : index
    %c0_51 = arith.constant 0 : index
    %49 = vector.load %arg10[%c50, %c0_51] : memref<54x648xf32, #tpu.memory_space<vmem>>, vector<2x648xf32>
    tpu.vector_store %arg10[%c50, %c0_51], %48 {strides = array<i32>} : memref<54x648xf32, #tpu.memory_space<vmem>>, vector<2x648xf32>,
    %c0_52 = arith.constant 0 : index
    %c38_53 = arith.constant 38 : index
    %50 = vector.load %arg1[%c0_52, %c38_53] : memref<2x768xf32, #tpu.memory_space<vmem>>, vector<2x648xf32>
    %c52 = arith.constant 52 : index
    %c0_54 = arith.constant 0 : index
    %51 = vector.load %arg10[%c52, %c0_54] : memref<54x648xf32, #tpu.memory_space<vmem>>, vector<2x648xf32>
    tpu.vector_store %arg10[%c52, %c0_54], %50 {strides = array<i32>} : memref<54x648xf32, #tpu.memory_space<vmem>>, vector<2x648xf32>,
    %c0_55 = arith.constant 0 : index
    %c0_56 = arith.constant 0 : index
    %52 = vector.load %arg3[%c0_55, %c0_56] : memref<4x54xf32, #tpu.memory_space<vmem>>, vector<4x54xf32>
    %c0_57 = arith.constant 0 : index
    %c0_58 = arith.constant 0 : index
    %53 = vector.load %arg10[%c0_57, %c0_58] : memref<54x648xf32, #tpu.memory_space<vmem>>, vector<54x648xf32>
    %cst_59 = arith.constant dense<0.000000e+00> : vector<4x648xf32>
    %54 = tpu.matmul %52, %53, %cst_59 {dimension_numbers = #tpu.dot_dimension_numbers<[1], [0], [0], [1], [0, 0, 1, 1], [], []>} : vector<4x54xf32>, vector<54x648xf32>, vector<4x648xf32> -> vector<4x648xf32>
    %cst_60 = arith.constant 0.000000e+00 : f32
    %55 = vector.shape_cast %3 : vector<1x648xi1> to vector<1x648xi1>
    %56 = vector.broadcast %55 : vector<1x648xi1> to vector<4x648xi1>
    %57 = vector.broadcast %cst_60 : f32 to vector<4x648xf32>
    %58 = arith.select %56, %54, %57 : vector<4x648xi1>, vector<4x648xf32>
    %cst_61 = arith.constant dense<0.000000e+00> : vector<4xf32>
    %59 = vector.multi_reduction <add>, %58, %cst_61 [1] : vector<4x648xf32> to vector<4xf32>
    %60 = vector.shape_cast %59 : vector<4xf32> to vector<4x1xf32>
    %cst_62 = arith.constant 0.001953125 : f32
    %61 = vector.broadcast %cst_62 : f32 to vector<4x1xf32>
    %62 = arith.mulf %60, %61 : vector<4x1xf32>
    %63 = vector.broadcast %62 : vector<4x1xf32> to vector<4x648xf32>
    %64 = arith.subf %54, %63 : vector<4x648xf32>
    %65 = arith.mulf %64, %64 : vector<4x648xf32>
    %cst_63 = arith.constant 0.000000e+00 : f32
    %66 = vector.shape_cast %3 : vector<1x648xi1> to vector<1x648xi1>
    %67 = vector.broadcast %66 : vector<1x648xi1> to vector<4x648xi1>
    %68 = vector.broadcast %cst_63 : f32 to vector<4x648xf32>
    %69 = arith.select %67, %65, %68 : vector<4x648xi1>, vector<4x648xf32>
    %cst_64 = arith.constant dense<0.000000e+00> : vector<4xf32>
    %70 = vector.multi_reduction <add>, %69, %cst_64 [1] : vector<4x648xf32> to vector<4xf32>
    %71 = vector.shape_cast %70 : vector<4xf32> to vector<4x1xf32>
    %cst_65 = arith.constant 0.001953125 : f32
    %72 = vector.broadcast %cst_65 : f32 to vector<4x1xf32>
    %73 = arith.mulf %71, %72 : vector<4x1xf32>
    %c0_66 = arith.constant 0 : index
    %c0_67 = arith.constant 0 : index
    %74 = vector.load %arg4[%c0_66, %c0_67] : memref<4x1xf32, #tpu.memory_space<vmem>>, vector<4x1xf32>
    %cst_68 = arith.constant 9.99999974E-6 : f32
    %75 = vector.broadcast %cst_68 : f32 to vector<4x1xf32>
    %76 = arith.addf %73, %75 : vector<4x1xf32>
    %77 = math.rsqrt %76 : vector<4x1xf32>
    %78 = arith.mulf %74, %77 : vector<4x1xf32>
    %79 = vector.broadcast %78 : vector<4x1xf32> to vector<4x648xf32>
    %80 = arith.mulf %64, %79 : vector<4x648xf32>
    %c0_69 = arith.constant 0 : index
    %c0_70 = arith.constant 0 : index
    %81 = vector.load %arg5[%c0_69, %c0_70] : memref<4x1xf32, #tpu.memory_space<vmem>>, vector<4x1xf32>
    %82 = vector.broadcast %81 : vector<4x1xf32> to vector<4x648xf32>
    %83 = arith.addf %80, %82 : vector<4x648xf32>
    %cst_71 = arith.constant 0.000000e+00 : f32
    %84 = vector.broadcast %cst_71 : f32 to vector<4x648xf32>
    %85 = arith.maximumf %83, %84 : vector<4x648xf32>
    %86 = vector.extract_strided_slice %85 {offsets = [0, 1], sizes = [4, 647], strides = [1, 1]} : vector<4x648xf32> to vector<4x647xf32>
    %87 = vector.extract_strided_slice %85 {offsets = [0, 0], sizes = [4, 1], strides = [1, 1]} : vector<4x648xf32> to vector<4x1xf32>
    %88 = tpu.concatenate %86, %87 in 1 : vector<4x647xf32>, vector<4x1xf32> -> vector<4x648xf32>
    %89 = vector.shape_cast %6 : vector<1x648xi1> to vector<1x648xi1>
    %90 = vector.broadcast %89 : vector<1x648xi1> to vector<4x648xi1>
    %91 = arith.select %90, %88, %85 : vector<4x648xi1>, vector<4x648xf32>
    %92 = vector.extract_strided_slice %91 {offsets = [0, 647], sizes = [4, 1], strides = [1, 1]} : vector<4x648xf32> to vector<4x1xf32>
    %93 = vector.extract_strided_slice %91 {offsets = [0, 0], sizes = [4, 647], strides = [1, 1]} : vector<4x648xf32> to vector<4x647xf32>
    %94 = tpu.concatenate %92, %93 in 1 : vector<4x1xf32>, vector<4x647xf32> -> vector<4x648xf32>
    %95 = vector.shape_cast %9 : vector<1x648xi1> to vector<1x648xi1>
    %96 = vector.broadcast %95 : vector<1x648xi1> to vector<4x648xi1>
    %97 = arith.select %96, %94, %91 : vector<4x648xi1>, vector<4x648xf32>
    %98 = vector.extract_strided_slice %97 {offsets = [0, 18], sizes = [4, 630], strides = [1, 1]} : vector<4x648xf32> to vector<4x630xf32>
    %99 = vector.extract_strided_slice %97 {offsets = [0, 0], sizes = [4, 18], strides = [1, 1]} : vector<4x648xf32> to vector<4x18xf32>
    %100 = tpu.concatenate %98, %99 in 1 : vector<4x630xf32>, vector<4x18xf32> -> vector<4x648xf32>
    %101 = vector.shape_cast %12 : vector<1x648xi1> to vector<1x648xi1>
    %102 = vector.broadcast %101 : vector<1x648xi1> to vector<4x648xi1>
    %103 = arith.select %102, %100, %97 : vector<4x648xi1>, vector<4x648xf32>
    %104 = vector.extract_strided_slice %103 {offsets = [0, 630], sizes = [4, 18], strides = [1, 1]} : vector<4x648xf32> to vector<4x18xf32>
    %105 = vector.extract_strided_slice %103 {offsets = [0, 0], sizes = [4, 630], strides = [1, 1]} : vector<4x648xf32> to vector<4x630xf32>
    %106 = tpu.concatenate %104, %105 in 1 : vector<4x18xf32>, vector<4x630xf32> -> vector<4x648xf32>
    %107 = vector.shape_cast %15 : vector<1x648xi1> to vector<1x648xi1>
    %108 = vector.broadcast %107 : vector<1x648xi1> to vector<4x648xi1>
    %109 = arith.select %108, %106, %103 : vector<4x648xi1>, vector<4x648xf32>
    %cst_72 = arith.constant 0.000000e+00 : f32
    %110 = vector.broadcast %cst_72 : f32 to vector<4x768xf32>
    %c0_73 = arith.constant 0 : index
    %c0_74 = arith.constant 0 : index
    %111 = vector.load %arg11[%c0_73, %c0_74] : memref<4x768xf32, #tpu.memory_space<vmem>>, vector<4x768xf32>
    tpu.vector_store %arg11[%c0_73, %c0_74], %110 {strides = array<i32>} : memref<4x768xf32, #tpu.memory_space<vmem>>, vector<4x768xf32>,
    %c0_75 = arith.constant 0 : index
    %c19_76 = arith.constant 19 : index
    %112 = vector.load %arg11[%c0_75, %c19_76] : memref<4x768xf32, #tpu.memory_space<vmem>>, vector<4x648xf32>
    tpu.vector_store %arg11[%c0_75, %c19_76], %109 {strides = array<i32>} : memref<4x768xf32, #tpu.memory_space<vmem>>, vector<4x648xf32>,
    %c0_77 = arith.constant 0 : index
    %c0_78 = arith.constant 0 : index
    %113 = vector.load %arg11[%c0_77, %c0_78] : memref<4x768xf32, #tpu.memory_space<vmem>>, vector<4x648xf32>
    %c0_79 = arith.constant 0 : index
    %c0_80 = arith.constant 0 : index
    %114 = vector.load %arg10[%c0_79, %c0_80] : memref<54x648xf32, #tpu.memory_space<vmem>>, vector<4x648xf32>
    tpu.vector_store %arg10[%c0_79, %c0_80], %113 {strides = array<i32>} : memref<54x648xf32, #tpu.memory_space<vmem>>, vector<4x648xf32>,
    %c0_81 = arith.constant 0 : index
    %c1_82 = arith.constant 1 : index
    %115 = vector.load %arg11[%c0_81, %c1_82] : memref<4x768xf32, #tpu.memory_space<vmem>>, vector<4x648xf32>
    %c4_83 = arith.constant 4 : index
    %c0_84 = arith.constant 0 : index
    %116 = vector.load %arg10[%c4_83, %c0_84] : memref<54x648xf32, #tpu.memory_space<vmem>>, vector<4x648xf32>
    tpu.vector_store %arg10[%c4_83, %c0_84], %115 {strides = array<i32>} : memref<54x648xf32, #tpu.memory_space<vmem>>, vector<4x648xf32>,
    %c0_85 = arith.constant 0 : index
    %c2_86 = arith.constant 2 : index
    %117 = vector.load %arg11[%c0_85, %c2_86] : memref<4x768xf32, #tpu.memory_space<vmem>>, vector<4x648xf32>
    %c8_87 = arith.constant 8 : index
    %c0_88 = arith.constant 0 : index
    %118 = vector.load %arg10[%c8_87, %c0_88] : memref<54x648xf32, #tpu.memory_space<vmem>>, vector<4x648xf32>
    tpu.vector_store %arg10[%c8_87, %c0_88], %117 {strides = array<i32>} : memref<54x648xf32, #tpu.memory_space<vmem>>, vector<4x648xf32>,
    %c0_89 = arith.constant 0 : index
    %c18_90 = arith.constant 18 : index
    %119 = vector.load %arg11[%c0_89, %c18_90] : memref<4x768xf32, #tpu.memory_space<vmem>>, vector<4x648xf32>
    %c12_91 = arith.constant 12 : index
    %c0_92 = arith.constant 0 : index
    %120 = vector.load %arg10[%c12_91, %c0_92] : memref<54x648xf32, #tpu.memory_space<vmem>>, vector<4x648xf32>
    tpu.vector_store %arg10[%c12_91, %c0_92], %119 {strides = array<i32>} : memref<54x648xf32, #tpu.memory_space<vmem>>, vector<4x648xf32>,
    %c0_93 = arith.constant 0 : index
    %c19_94 = arith.constant 19 : index
    %121 = vector.load %arg11[%c0_93, %c19_94] : memref<4x768xf32, #tpu.memory_space<vmem>>, vector<4x648xf32>
    %c16_95 = arith.constant 16 : index
    %c0_96 = arith.constant 0 : index
    %122 = vector.load %arg10[%c16_95, %c0_96] : memref<54x648xf32, #tpu.memory_space<vmem>>, vector<4x648xf32>
    tpu.vector_store %arg10[%c16_95, %c0_96], %121 {strides = array<i32>} : memref<54x648xf32, #tpu.memory_space<vmem>>, vector<4x648xf32>,
    %c0_97 = arith.constant 0 : index
    %c20_98 = arith.constant 20 : index
    %123 = vector.load %arg11[%c0_97, %c20_98] : memref<4x768xf32, #tpu.memory_space<vmem>>, vector<4x648xf32>
    %c20_99 = arith.constant 20 : index
    %c0_100 = arith.constant 0 : index
    %124 = vector.load %arg10[%c20_99, %c0_100] : memref<54x648xf32, #tpu.memory_space<vmem>>, vector<4x648xf32>
    tpu.vector_store %arg10[%c20_99, %c0_100], %123 {strides = array<i32>} : memref<54x648xf32, #tpu.memory_space<vmem>>, vector<4x648xf32>,
    %c0_101 = arith.constant 0 : index
    %c36_102 = arith.constant 36 : index
    %125 = vector.load %arg11[%c0_101, %c36_102] : memref<4x768xf32, #tpu.memory_space<vmem>>, vector<4x648xf32>
    %c24_103 = arith.constant 24 : index
    %c0_104 = arith.constant 0 : index
    %126 = vector.load %arg10[%c24_103, %c0_104] : memref<54x648xf32, #tpu.memory_space<vmem>>, vector<4x648xf32>
    tpu.vector_store %arg10[%c24_103, %c0_104], %125 {strides = array<i32>} : memref<54x648xf32, #tpu.memory_space<vmem>>, vector<4x648xf32>,
    %c0_105 = arith.constant 0 : index
    %c37_106 = arith.constant 37 : index
    %127 = vector.load %arg11[%c0_105, %c37_106] : memref<4x768xf32, #tpu.memory_space<vmem>>, vector<4x648xf32>
    %c28_107 = arith.constant 28 : index
    %c0_108 = arith.constant 0 : index
    %128 = vector.load %arg10[%c28_107, %c0_108] : memref<54x648xf32, #tpu.memory_space<vmem>>, vector<4x648xf32>
    tpu.vector_store %arg10[%c28_107, %c0_108], %127 {strides = array<i32>} : memref<54x648xf32, #tpu.memory_space<vmem>>, vector<4x648xf32>,
    %c0_109 = arith.constant 0 : index
    %c38_110 = arith.constant 38 : index
    %129 = vector.load %arg11[%c0_109, %c38_110] : memref<4x768xf32, #tpu.memory_space<vmem>>, vector<4x648xf32>
    %c32_111 = arith.constant 32 : index
    %c0_112 = arith.constant 0 : index
    %130 = vector.load %arg10[%c32_111, %c0_112] : memref<54x648xf32, #tpu.memory_space<vmem>>, vector<4x648xf32>
    tpu.vector_store %arg10[%c32_111, %c0_112], %129 {strides = array<i32>} : memref<54x648xf32, #tpu.memory_space<vmem>>, vector<4x648xf32>,
    %c0_113 = arith.constant 0 : index
    %c0_114 = arith.constant 0 : index
    %131 = vector.load %arg6[%c0_113, %c0_114] : memref<4x36xf32, #tpu.memory_space<vmem>>, vector<4x36xf32>
    %c0_115 = arith.constant 0 : index
    %c0_116 = arith.constant 0 : index
    %132 = vector.load %arg10[%c0_115, %c0_116] : memref<54x648xf32, #tpu.memory_space<vmem>>, vector<36x648xf32>
    %cst_117 = arith.constant dense<0.000000e+00> : vector<4x648xf32>
    %133 = tpu.matmul %131, %132, %cst_117 {dimension_numbers = #tpu.dot_dimension_numbers<[1], [0], [0], [1], [0, 0, 1, 1], [], []>} : vector<4x36xf32>, vector<36x648xf32>, vector<4x648xf32> -> vector<4x648xf32>
    %cst_118 = arith.constant 0.000000e+00 : f32
    %134 = vector.shape_cast %3 : vector<1x648xi1> to vector<1x648xi1>
    %135 = vector.broadcast %134 : vector<1x648xi1> to vector<4x648xi1>
    %136 = vector.broadcast %cst_118 : f32 to vector<4x648xf32>
    %137 = arith.select %135, %133, %136 : vector<4x648xi1>, vector<4x648xf32>
    %cst_119 = arith.constant dense<0.000000e+00> : vector<4xf32>
    %138 = vector.multi_reduction <add>, %137, %cst_119 [1] : vector<4x648xf32> to vector<4xf32>
    %139 = vector.shape_cast %138 : vector<4xf32> to vector<4x1xf32>
    %cst_120 = arith.constant 0.001953125 : f32
    %140 = vector.broadcast %cst_120 : f32 to vector<4x1xf32>
    %141 = arith.mulf %139, %140 : vector<4x1xf32>
    %142 = vector.broadcast %141 : vector<4x1xf32> to vector<4x648xf32>
    %143 = arith.subf %133, %142 : vector<4x648xf32>
    %144 = arith.mulf %143, %143 : vector<4x648xf32>
    %cst_121 = arith.constant 0.000000e+00 : f32
    %145 = vector.shape_cast %3 : vector<1x648xi1> to vector<1x648xi1>
    %146 = vector.broadcast %145 : vector<1x648xi1> to vector<4x648xi1>
    %147 = vector.broadcast %cst_121 : f32 to vector<4x648xf32>
    %148 = arith.select %146, %144, %147 : vector<4x648xi1>, vector<4x648xf32>
    %cst_122 = arith.constant dense<0.000000e+00> : vector<4xf32>
    %149 = vector.multi_reduction <add>, %148, %cst_122 [1] : vector<4x648xf32> to vector<4xf32>
    %150 = vector.shape_cast %149 : vector<4xf32> to vector<4x1xf32>
    %cst_123 = arith.constant 0.001953125 : f32
    %151 = vector.broadcast %cst_123 : f32 to vector<4x1xf32>
    %152 = arith.mulf %150, %151 : vector<4x1xf32>
    %c0_124 = arith.constant 0 : index
    %c0_125 = arith.constant 0 : index
    %153 = vector.load %arg7[%c0_124, %c0_125] : memref<4x1xf32, #tpu.memory_space<vmem>>, vector<4x1xf32>
    %cst_126 = arith.constant 9.99999974E-6 : f32
    %154 = vector.broadcast %cst_126 : f32 to vector<4x1xf32>
    %155 = arith.addf %152, %154 : vector<4x1xf32>
    %156 = math.rsqrt %155 : vector<4x1xf32>
    %157 = arith.mulf %153, %156 : vector<4x1xf32>
    %158 = vector.broadcast %157 : vector<4x1xf32> to vector<4x648xf32>
    %159 = arith.mulf %143, %158 : vector<4x648xf32>
    %c0_127 = arith.constant 0 : index
    %c0_128 = arith.constant 0 : index
    %160 = vector.load %arg8[%c0_127, %c0_128] : memref<4x1xf32, #tpu.memory_space<vmem>>, vector<4x1xf32>
    %161 = vector.broadcast %160 : vector<4x1xf32> to vector<4x648xf32>
    %162 = arith.addf %159, %161 : vector<4x648xf32>
    %cst_129 = arith.constant 0.000000e+00 : f32
    %163 = vector.broadcast %cst_129 : f32 to vector<4x648xf32>
    %164 = arith.maximumf %162, %163 : vector<4x648xf32>
    %c0_130 = arith.constant 0 : index
    %c0_131 = arith.constant 0 : index
    %165 = vector.load %arg9[%c0_130, %c0_131] : memref<4x648xf32, #tpu.memory_space<vmem>>, vector<4x648xf32>
    tpu.vector_store %arg9[%c0_130, %c0_131], %164 {strides = array<i32>} : memref<4x648xf32, #tpu.memory_space<vmem>>, vector<4x648xf32>,
    return
  }
}

</mosaic_0001>

<llo_original>
// kernel: tpu_custom_call.1
$region0: #{tpu_custom_call.1}
  #allocation0 [shape = 'u32[]', space=smem, size = 0x4, offset = 0x4, fixed_abs, tag = 'smem constant byte address 0x4 - core index']
  #allocation1 [shape = 'u32[144,128]{1,0:T(1,128)}', space=vmem, size = 0x12000, scoped, tag = 'internal scratch']
  #allocation2 [shape = 'f32[54,648]{1,0:T(8,128)}', space=vmem, size = 0x2a000, scoped, tag = 'scratch operand']
  #allocation3 [shape = 'f32[4,768]{1,0:T(4,128)}', space=vmem, size = 0x3000, scoped, tag = 'scratch operand']
  %s0 = inlined_call_operand.hbm [shape: f32[4,768], index: 0, kind: input, shape index: {}]
  %s1 = inlined_call_operand.hbm [shape: f32[2,768], index: 1, kind: input, shape index: {}]
  %s2 = inlined_call_operand.hbm [shape: f32[5,648], index: 2, kind: input, shape index: {}]
  %s3 = inlined_call_operand.hbm [shape: f32[4,54], index: 3, kind: input, shape index: {}]
  %s4 = inlined_call_operand.hbm [shape: f32[4,1], index: 4, kind: input, shape index: {}]
  %s5 = inlined_call_operand.hbm [shape: f32[4,1], index: 5, kind: input, shape index: {}]
  %s6 = inlined_call_operand.hbm [shape: f32[4,36], index: 6, kind: input, shape index: {}]
  %s7 = inlined_call_operand.hbm [shape: f32[4,1], index: 7, kind: input, shape index: {}]
  %s8 = inlined_call_operand.hbm [shape: f32[4,1], index: 8, kind: input, shape index: {}]
  %s9 = inlined_call_operand.hbm [shape: f32[4,648], index: 9, kind: output, shape index: {}]
  %s10 = sld [smem:[#allocation0]]
  $region82: #{tpu_custom_call.1} parent=0
    _
  %s12 = ssub.s32 1, %s10
  %s13 = scalar_select 0, %s12, %s10
  $region1: #{tpu_custom_call.1} parent=0
    #allocation4 [shape = 'u8[12288]{0}', space=vmem, size = 0x3000, scoped, tag = 'input window, operand 0, single buffered']
    #allocation5 [shape = 's32[1]{0}', space=sflag, size = 0x4, scoped, tag = 'scoped memory for tpu_custom_call.1']
    #allocation6 [shape = 's32[1]{0}', space=sflag, size = 0x4, scoped, tag = 'scoped memory for tpu_custom_call.1']
    #allocation7 [shape = 'u8[6144]{0}', space=vmem, size = 0x1800, scoped, tag = 'input window, operand 1, single buffered']
    #allocation8 [shape = 's32[1]{0}', space=sflag, size = 0x4, scoped, tag = 'scoped memory for tpu_custom_call.1']
    #allocation9 [shape = 'u8[24576]{0}', space=vmem, size = 0x6000, scoped, tag = 'input window, operand 2, single buffered']
    #allocation10 [shape = 'u8[2048]{0}', space=vmem, size = 0x800, scoped, tag = 'input window, operand 3, single buffered']
    #allocation11 [shape = 's32[1]{0}', space=sflag, size = 0x4, scoped, tag = 'scoped memory for tpu_custom_call.1']
    #allocation12 [shape = 'u8[2048]{0}', space=vmem, size = 0x800, scoped, tag = 'input window, operand 4, single buffered']
    #allocation13 [shape = 'u8[2048]{0}', space=vmem, size = 0x800, scoped, tag = 'input window, operand 5, single buffered']
    #allocation14 [shape = 's32[1]{0}', space=sflag, size = 0x4, scoped, tag = 'scoped memory for tpu_custom_call.1']
    #allocation15 [shape = 'u8[2048]{0}', space=vmem, size = 0x800, scoped, tag = 'input window, operand 6, single buffered']
    #allocation16 [shape = 'u8[2048]{0}', space=vmem, size = 0x800, scoped, tag = 'input window, operand 7, single buffered']
    #allocation17 [shape = 's32[1]{0}', space=sflag, size = 0x4, scoped, tag = 'scoped memory for tpu_custom_call.1']
    #allocation18 [shape = 'u8[2048]{0}', space=vmem, size = 0x800, scoped, tag = 'input window, operand 8, single buffered']
    #allocation19 [shape = 'u8[12288]{0}', space=vmem, size = 0x3000, scoped, tag = 'output window, operand 0, single buffered']
    %14 = vsyncpa [#allocation5], 0
    %15 = vsyncpa [#allocation8], 0
    %16 = vsyncpa [#allocation11], 0
    %17 = vsyncpa [#allocation14], 0
    %18 = vsyncpa [#allocation17], 0
    %19 = vsyncpa [#allocation6], 0
    // Predicated region
    $region2: #{tpu_custom_call.1} parent=1 // pred_check
      _
    $region3: #{tpu_custom_call.1} parent=1 // pred_check_branch
      %21 = sbr.rel (0) target = $region5
    $region4: #{tpu_custom_call.1} parent=1 // pred_region
      %s23 = ssub.s32 384, 384
      %24 = vsyncadd [#allocation5], %s23
      %s26 = sshll.u32 [#allocation4], 4
      %s27 = int_to_ptr.vmem [resolvable:$true] %s26
      %29 = dma.hbm_to_vmem [thread:$0]  %s0, 384, %s27, [#allocation5]
    $region5: #{tpu_custom_call.1} parent=1 // pred_fallthru
      _
    // Predicated region
    $region6: #{tpu_custom_call.1} parent=1 // pred_check
      _
    $region7: #{tpu_custom_call.1} parent=1 // pred_check_branch
      %31 = sbr.rel (0) target = $region9
    $region8: #{tpu_custom_call.1} parent=1 // pred_region
      %s33 = ssub.s32 192, 192
      %34 = vsyncadd [#allocation8], %s33
      %s36 = sshll.u32 [#allocation7], 4
      %s37 = int_to_ptr.vmem [resolvable:$true] %s36
      %39 = dma.hbm_to_vmem [thread:$0]  %s1, 192, %s37, [#allocation8]
    $region9: #{tpu_custom_call.1} parent=1 // pred_fallthru
      _
    // Predicated region
    $region10: #{tpu_custom_call.1} parent=1 // pred_check
      _
    $region11: #{tpu_custom_call.1} parent=1 // pred_check_branch
      %41 = sbr.rel (0) target = $region13
    $region12: #{tpu_custom_call.1} parent=1 // pred_region
      %s43 = ssub.s32 768, 768
      %44 = vsyncadd [#allocation8], %s43
      %s46 = sshll.u32 [#allocation9], 4
      %s47 = int_to_ptr.vmem [resolvable:$true] %s46
      %49 = dma.hbm_to_vmem [thread:$0]  %s2, 768, %s47, [#allocation8]
    $region13: #{tpu_custom_call.1} parent=1 // pred_fallthru
      _
    // Predicated region
    $region14: #{tpu_custom_call.1} parent=1 // pred_check
      _
    $region15: #{tpu_custom_call.1} parent=1 // pred_check_branch
      %51 = sbr.rel (0) target = $region17
    $region16: #{tpu_custom_call.1} parent=1 // pred_region
      %s53 = ssub.s32 64, 64
      %54 = vsyncadd [#allocation11], %s53
      %s56 = sshll.u32 [#allocation10], 4
      %s57 = int_to_ptr.vmem [resolvable:$true] %s56
      %59 = dma.hbm_to_vmem [thread:$0]  %s3, 64, %s57, [#allocation11]
    $region17: #{tpu_custom_call.1} parent=1 // pred_fallthru
      _
    // Predicated region
    $region18: #{tpu_custom_call.1} parent=1 // pred_check
      _
    $region19: #{tpu_custom_call.1} parent=1 // pred_check_branch
      %61 = sbr.rel (0) target = $region21
    $region20: #{tpu_custom_call.1} parent=1 // pred_region
      %s63 = ssub.s32 64, 64
      %64 = vsyncadd [#allocation11], %s63
      %s66 = sshll.u32 [#allocation12], 4
      %s67 = int_to_ptr.vmem [resolvable:$true] %s66
      %69 = dma.hbm_to_vmem [thread:$0]  %s4, 64, %s67, [#allocation11]
    $region21: #{tpu_custom_call.1} parent=1 // pred_fallthru
      _
    // Predicated region
    $region22: #{tpu_custom_call.1} parent=1 // pred_check
      _
    $region23: #{tpu_custom_call.1} parent=1 // pred_check_branch
      %71 = sbr.rel (0) target = $region25
    $region24: #{tpu_custom_call.1} parent=1 // pred_region
      %s73 = ssub.s32 64, 64
      %74 = vsyncadd [#allocation14], %s73
      %s76 = sshll.u32 [#allocation13], 4
      %s77 = int_to_ptr.vmem [resolvable:$true] %s76
      %79 = dma.hbm_to_vmem [thread:$0]  %s5, 64, %s77, [#allocation14]
    $region25: #{tpu_custom_call.1} parent=1 // pred_fallthru
      _
    // Predicated region
    $region26: #{tpu_custom_call.1} parent=1 // pred_check
      _
    $region27: #{tpu_custom_call.1} parent=1 // pred_check_branch
      %81 = sbr.rel (0) target = $region29
    $region28: #{tpu_custom_call.1} parent=1 // pred_region
      %s83 = ssub.s32 64, 64
      %84 = vsyncadd [#allocation14], %s83
      %s86 = sshll.u32 [#allocation15], 4
      %s87 = int_to_ptr.vmem [resolvable:$true] %s86
      %89 = dma.hbm_to_vmem [thread:$0]  %s6, 64, %s87, [#allocation14]
    $region29: #{tpu_custom_call.1} parent=1 // pred_fallthru
      _
    // Predicated region
    $region30: #{tpu_custom_call.1} parent=1 // pred_check
      _
    $region31: #{tpu_custom_call.1} parent=1 // pred_check_branch
      %91 = sbr.rel (0) target = $region33
    $region32: #{tpu_custom_call.1} parent=1 // pred_region
      %s93 = ssub.s32 64, 64
      %94 = vsyncadd [#allocation17], %s93
      %s96 = sshll.u32 [#allocation16], 4
      %s97 = int_to_ptr.vmem [resolvable:$true] %s96
      %99 = dma.hbm_to_vmem [thread:$0]  %s7, 64, %s97, [#allocation17]
    $region33: #{tpu_custom_call.1} parent=1 // pred_fallthru
      _
    // Predicated region
    $region34: #{tpu_custom_call.1} parent=1 // pred_check
      _
    $region35: #{tpu_custom_call.1} parent=1 // pred_check_branch
      %101 = sbr.rel (0) target = $region37
    $region36: #{tpu_custom_call.1} parent=1 // pred_region
      %s103 = ssub.s32 64, 64
      %104 = vsyncadd [#allocation17], %s103
      %s106 = sshll.u32 [#allocation18], 4
      %s107 = int_to_ptr.vmem [resolvable:$true] %s106
      %109 = dma.hbm_to_vmem [thread:$0]  %s8, 64, %s107, [#allocation17]
    $region37: #{tpu_custom_call.1} parent=1 // pred_fallthru
      _
    // Predicated region
    $region38: #{tpu_custom_call.1} parent=1 // pred_check
      _
    $region39: #{tpu_custom_call.1} parent=1 // pred_check_branch
      %111 = sbr.rel (0) target = $region41
    $region40: #{tpu_custom_call.1} parent=1 // pred_region
      %112 = dma.done [#allocation5], 384
    $region41: #{tpu_custom_call.1} parent=1 // pred_fallthru
      _
    // Predicated region
    $region42: #{tpu_custom_call.1} parent=1 // pred_check
      _
    $region43: #{tpu_custom_call.1} parent=1 // pred_check_branch
      %114 = sbr.rel (0) target = $region45
    $region44: #{tpu_custom_call.1} parent=1 // pred_region
      %115 = dma.done [#allocation8], 192
    $region45: #{tpu_custom_call.1} parent=1 // pred_fallthru
      _
    // Predicated region
    $region46: #{tpu_custom_call.1} parent=1 // pred_check
      _
    $region47: #{tpu_custom_call.1} parent=1 // pred_check_branch
      %117 = sbr.rel (0) target = $region49
    $region48: #{tpu_custom_call.1} parent=1 // pred_region
      %118 = dma.done [#allocation8], 768
    $region49: #{tpu_custom_call.1} parent=1 // pred_fallthru
      _
    // Predicated region
    $region50: #{tpu_custom_call.1} parent=1 // pred_check
      _
    $region51: #{tpu_custom_call.1} parent=1 // pred_check_branch
      %120 = sbr.rel (0) target = $region53
    $region52: #{tpu_custom_call.1} parent=1 // pred_region
      %121 = dma.done [#allocation11], 64
    $region53: #{tpu_custom_call.1} parent=1 // pred_fallthru
      _
    // Predicated region
    $region54: #{tpu_custom_call.1} parent=1 // pred_check
      _
    $region55: #{tpu_custom_call.1} parent=1 // pred_check_branch
      %123 = sbr.rel (0) target = $region57
    $region56: #{tpu_custom_call.1} parent=1 // pred_region
      %124 = dma.done [#allocation11], 64
    $region57: #{tpu_custom_call.1} parent=1 // pred_fallthru
      _
    // Predicated region
    $region58: #{tpu_custom_call.1} parent=1 // pred_check
      _
    $region59: #{tpu_custom_call.1} parent=1 // pred_check_branch
      %126 = sbr.rel (0) target = $region61
    $region60: #{tpu_custom_call.1} parent=1 // pred_region
      %127 = dma.done [#allocation14], 64
    $region61: #{tpu_custom_call.1} parent=1 // pred_fallthru
      _
    // Predicated region
    $region62: #{tpu_custom_call.1} parent=1 // pred_check
      _
    $region63: #{tpu_custom_call.1} parent=1 // pred_check_branch
      %129 = sbr.rel (0) target = $region65
    $region64: #{tpu_custom_call.1} parent=1 // pred_region
      %130 = dma.done [#allocation14], 64
    $region65: #{tpu_custom_call.1} parent=1 // pred_fallthru
      _
    // Predicated region
    $region66: #{tpu_custom_call.1} parent=1 // pred_check
      _
    $region67: #{tpu_custom_call.1} parent=1 // pred_check_branch
      %132 = sbr.rel (0) target = $region69
    $region68: #{tpu_custom_call.1} parent=1 // pred_region
      %133 = dma.done [#allocation17], 64
    $region69: #{tpu_custom_call.1} parent=1 // pred_fallthru
      _
    // Predicated region
    $region70: #{tpu_custom_call.1} parent=1 // pred_check
      _
    $region71: #{tpu_custom_call.1} parent=1 // pred_check_branch
      %135 = sbr.rel (0) target = $region73
    $region72: #{tpu_custom_call.1} parent=1 // pred_region
      %136 = dma.done [#allocation17], 64
    $region73: #{tpu_custom_call.1} parent=1 // pred_fallthru
      _
    %v137 = vld [vmem:[#allocation9] sm:$0x1f]
    %v138 = vld [vmem:[#allocation9 + $0x8] sm:$0x1f]
    %v139 = vld [vmem:[#allocation9 + $0x10] sm:$0x1f]
    %v140 = vld [vmem:[#allocation9 + $0x18] sm:$0x1f]
    %v141 = vld [vmem:[#allocation9 + $0x20] sm:$0x1f]
    %v142 = vld [vmem:[#allocation9 + $0x28] sm:$0x1f]
    %vm143 = vcmp.gt.f32.partialorder %v137, 0.5
    %vm144 = vcmp.gt.f32.partialorder %v138, 0.5
    %vm145 = vcmp.gt.f32.partialorder %v139, 0.5
    %vm146 = vcmp.gt.f32.partialorder %v140, 0.5
    %vm147 = vcmp.gt.f32.partialorder %v141, 0.5
    %vm148 = vcmp.gt.f32.partialorder %v142, 0.5
    %v149 = vld [vmem:[#allocation4] sm:$0xff]
    %v150 = vld [vmem:[#allocation4 + $0x8] sm:$0xff]
    %v151 = vld [vmem:[#allocation4 + $0x10] sm:$0xff]
    %v155 = vcombine.high %v149, %v149
    %v156 = vcombine.high %v150, %v150
    %v157 = vcombine.high %v151, %v151
    %161 = vst [vmem:[#allocation2] sm:$0xf] %v149
    %162 = vst [vmem:[#allocation2 + $0x8] sm:$0xf] %v155
    %163 = vst [vmem:[#allocation2 + $0x10] sm:$0xf] %v150
    %164 = vst [vmem:[#allocation2 + $0x18] sm:$0xf] %v156
    %165 = vst [vmem:[#allocation2 + $0x20] sm:$0xf] %v151
    %vm166 = vcmask 60416
    %167 = vst.msk [vmem:[#allocation2 + $0x28] sm:$0xf] %vm166, %v157
    %v168 = vld [vmem:[#allocation4] sm:$0xff]
    %v169 = vld [vmem:[#allocation4 + $0x8] sm:$0xff]
    %v170 = vld [vmem:[#allocation4 + $0x10] sm:$0xff]
    %v174 = vcombine.low %v168, %v168
    %v175 = vcombine.low %v169, %v169
    %v176 = vcombine.low %v170, %v170
    %177 = vrot.lane.b32.xlu0 %v174, 127
    %v178 = vpop.permute.xlu0 %177
    %179 = vrot.lane.b32.xlu0 %v168, 127
    %v180 = vpop.permute.xlu0 %179
    %181 = vrot.lane.b32.xlu0 %v175, 127
    %v182 = vpop.permute.xlu0 %181
    %183 = vrot.lane.b32.xlu0 %v169, 127
    %v184 = vpop.permute.xlu0 %183
    %185 = vrot.lane.b32.xlu0 %v176, 127
    %v186 = vpop.permute.xlu0 %185
    %187 = vrot.lane.b32.xlu0 %v170, 127
    %v188 = vpop.permute.xlu0 %187
    %vm189 = vcmask 1039360
    %v190 = vsel %vm189, %v178, %v180
    %v191 = vsel %vm189, %v180, %v182
    %v192 = vsel %vm189, %v182, %v184
    %v193 = vsel %vm189, %v184, %v186
    %v194 = vsel %vm189, %v186, %v188
    %201 = vst [vmem:[#allocation2] sm:$0xf0] %v190
    %202 = vst [vmem:[#allocation2 + $0x8] sm:$0xf0] %v191
    %203 = vst [vmem:[#allocation2 + $0x10] sm:$0xf0] %v192
    %204 = vst [vmem:[#allocation2 + $0x18] sm:$0xf0] %v193
    %205 = vst [vmem:[#allocation2 + $0x20] sm:$0xf0] %v194
    %vm206 = vcmask 64516
    %207 = vst.msk [vmem:[#allocation2 + $0x28] sm:$0xf0] %vm206, %v188
    %v208 = vld [vmem:[#allocation4] sm:$0xff]
    %v209 = vld [vmem:[#allocation4 + $0x8] sm:$0xff]
    %v210 = vld [vmem:[#allocation4 + $0x10] sm:$0xff]
    %v214 = vcombine.high %v208, %v208
    %v215 = vcombine.high %v209, %v209
    %v216 = vcombine.high %v210, %v210
    %217 = vrot.lane.b32.xlu0 %v208, 126
    %v218 = vpop.permute.xlu0 %217
    %219 = vrot.lane.b32.xlu0 %v214, 126
    %v220 = vpop.permute.xlu0 %219
    %221 = vrot.lane.b32.xlu0 %v209, 126
    %v222 = vpop.permute.xlu0 %221
    %223 = vrot.lane.b32.xlu0 %v215, 126
    %v224 = vpop.permute.xlu0 %223
    %225 = vrot.lane.b32.xlu0 %v210, 126
    %v226 = vpop.permute.xlu0 %225
    %227 = vrot.lane.b32.xlu0 %v216, 126
    %v228 = vpop.permute.xlu0 %227
    %vm229 = vcmask 1031168
    %v230 = vsel %vm229, %v218, %v220
    %v231 = vsel %vm229, %v220, %v222
    %v232 = vsel %vm229, %v222, %v224
    %v233 = vsel %vm229, %v224, %v226
    %v234 = vsel %vm229, %v226, %v228
    %241 = vst [vmem:[#allocation2 + $0x30] sm:$0xf] %v230
    %242 = vst [vmem:[#allocation2 + $0x38] sm:$0xf] %v231
    %243 = vst [vmem:[#allocation2 + $0x40] sm:$0xf] %v232
    %244 = vst [vmem:[#allocation2 + $0x48] sm:$0xf] %v233
    %245 = vst [vmem:[#allocation2 + $0x50] sm:$0xf] %v234
    %246 = vst.msk [vmem:[#allocation2 + $0x58] sm:$0xf] %vm166, %v228
    %v247 = vld [vmem:[#allocation4] sm:$0xff]
    %v248 = vld [vmem:[#allocation4 + $0x8] sm:$0xff]
    %v249 = vld [vmem:[#allocation4 + $0x10] sm:$0xff]
    %v253 = vcombine.low %v247, %v247
    %v254 = vcombine.low %v248, %v248
    %v255 = vcombine.low %v249, %v249
    %256 = vrot.lane.b32.xlu0 %v253, 110
    %v257 = vpop.permute.xlu0 %256
    %258 = vrot.lane.b32.xlu0 %v247, 110
    %v259 = vpop.permute.xlu0 %258
    %260 = vrot.lane.b32.xlu0 %v254, 110
    %v261 = vpop.permute.xlu0 %260
    %262 = vrot.lane.b32.xlu0 %v248, 110
    %v263 = vpop.permute.xlu0 %262
    %264 = vrot.lane.b32.xlu0 %v255, 110
    %v265 = vpop.permute.xlu0 %264
    %266 = vrot.lane.b32.xlu0 %v249, 110
    %v267 = vpop.permute.xlu0 %266
    %vm268 = vcmask 900096
    %v269 = vsel %vm268, %v257, %v259
    %v270 = vsel %vm268, %v259, %v261
    %v271 = vsel %vm268, %v261, %v263
    %v272 = vsel %vm268, %v263, %v265
    %v273 = vsel %vm268, %v265, %v267
    %280 = vst [vmem:[#allocation2 + $0x30] sm:$0xf0] %v269
    %281 = vst [vmem:[#allocation2 + $0x38] sm:$0xf0] %v270
    %282 = vst [vmem:[#allocation2 + $0x40] sm:$0xf0] %v271
    %283 = vst [vmem:[#allocation2 + $0x48] sm:$0xf0] %v272
    %284 = vst [vmem:[#allocation2 + $0x50] sm:$0xf0] %v273
    %285 = vst.msk [vmem:[#allocation2 + $0x58] sm:$0xf0] %vm206, %v267
    %v286 = vld [vmem:[#allocation4] sm:$0xff]
    %v287 = vld [vmem:[#allocation4 + $0x8] sm:$0xff]
    %v288 = vld [vmem:[#allocation4 + $0x10] sm:$0xff]
    %v292 = vcombine.high %v286, %v286
    %v293 = vcombine.high %v287, %v287
    %v294 = vcombine.high %v288, %v288
    %295 = vrot.lane.b32.xlu0 %v286, 109
    %v296 = vpop.permute.xlu0 %295
    %297 = vrot.lane.b32.xlu0 %v292, 109
    %v298 = vpop.permute.xlu0 %297
    %299 = vrot.lane.b32.xlu0 %v287, 109
    %v300 = vpop.permute.xlu0 %299
    %301 = vrot.lane.b32.xlu0 %v293, 109
    %v302 = vpop.permute.xlu0 %301
    %303 = vrot.lane.b32.xlu0 %v288, 109
    %v304 = vpop.permute.xlu0 %303
    %305 = vrot.lane.b32.xlu0 %v294, 109
    %v306 = vpop.permute.xlu0 %305
    %vm307 = vcmask 891904
    %v308 = vsel %vm307, %v296, %v298
    %v309 = vsel %vm307, %v298, %v300
    %v310 = vsel %vm307, %v300, %v302
    %v311 = vsel %vm307, %v302, %v304
    %v312 = vsel %vm307, %v304, %v306
    %319 = vst [vmem:[#allocation2 + $0x60] sm:$0xf] %v308
    %320 = vst [vmem:[#allocation2 + $0x68] sm:$0xf] %v309
    %321 = vst [vmem:[#allocation2 + $0x70] sm:$0xf] %v310
    %322 = vst [vmem:[#allocation2 + $0x78] sm:$0xf] %v311
    %323 = vst [vmem:[#allocation2 + $0x80] sm:$0xf] %v312
    %324 = vst.msk [vmem:[#allocation2 + $0x88] sm:$0xf] %vm166, %v306
    %v325 = vld [vmem:[#allocation4] sm:$0xff]
    %v326 = vld [vmem:[#allocation4 + $0x8] sm:$0xff]
    %v327 = vld [vmem:[#allocation4 + $0x10] sm:$0xff]
    %v331 = vcombine.low %v325, %v325
    %v332 = vcombine.low %v326, %v326
    %v333 = vcombine.low %v327, %v327
    %334 = vrot.lane.b32.xlu0 %v331, 108
    %v335 = vpop.permute.xlu0 %334
    %336 = vrot.lane.b32.xlu0 %v325, 108
    %v337 = vpop.permute.xlu0 %336
    %338 = vrot.lane.b32.xlu0 %v332, 108
    %v339 = vpop.permute.xlu0 %338
    %340 = vrot.lane.b32.xlu0 %v326, 108
    %v341 = vpop.permute.xlu0 %340
    %342 = vrot.lane.b32.xlu0 %v333, 108
    %v343 = vpop.permute.xlu0 %342
    %344 = vrot.lane.b32.xlu0 %v327, 108
    %v345 = vpop.permute.xlu0 %344
    %vm346 = vcmask 883712
    %v347 = vsel %vm346, %v335, %v337
    %v348 = vsel %vm346, %v337, %v339
    %v349 = vsel %vm346, %v339, %v341
    %v350 = vsel %vm346, %v341, %v343
    %v351 = vsel %vm346, %v343, %v345
    %358 = vst [vmem:[#allocation2 + $0x60] sm:$0xf0] %v347
    %359 = vst [vmem:[#allocation2 + $0x68] sm:$0xf0] %v348
    %360 = vst [vmem:[#allocation2 + $0x70] sm:$0xf0] %v349
    %361 = vst [vmem:[#allocation2 + $0x78] sm:$0xf0] %v350
    %362 = vst [vmem:[#allocation2 + $0x80] sm:$0xf0] %v351
    %363 = vst.msk [vmem:[#allocation2 + $0x88] sm:$0xf0] %vm206, %v345
    %v364 = vld [vmem:[#allocation4] sm:$0xff]
    %v365 = vld [vmem:[#allocation4 + $0x8] sm:$0xff]
    %v366 = vld [vmem:[#allocation4 + $0x10] sm:$0xff]
    %v370 = vcombine.high %v364, %v364
    %v371 = vcombine.high %v365, %v365
    %v372 = vcombine.high %v366, %v366
    %373 = vrot.lane.b32.xlu0 %v364, 92
    %v374 = vpop.permute.xlu0 %373
    %375 = vrot.lane.b32.xlu0 %v370, 92
    %v376 = vpop.permute.xlu0 %375
    %377 = vrot.lane.b32.xlu0 %v365, 92
    %v378 = vpop.permute.xlu0 %377
    %379 = vrot.lane.b32.xlu0 %v371, 92
    %v380 = vpop.permute.xlu0 %379
    %381 = vrot.lane.b32.xlu0 %v366, 92
    %v382 = vpop.permute.xlu0 %381
    %383 = vrot.lane.b32.xlu0 %v372, 92
    %v384 = vpop.permute.xlu0 %383
    %vm385 = vcmask 752640
    %v386 = vsel %vm385, %v374, %v376
    %v387 = vsel %vm385, %v376, %v378
    %v388 = vsel %vm385, %v378, %v380
    %v389 = vsel %vm385, %v380, %v382
    %v390 = vsel %vm385, %v382, %v384
    %397 = vst [vmem:[#allocation2 + $0x90] sm:$0xf] %v386
    %398 = vst [vmem:[#allocation2 + $0x98] sm:$0xf] %v387
    %399 = vst [vmem:[#allocation2 + $0xa0] sm:$0xf] %v388
    %400 = vst [vmem:[#allocation2 + $0xa8] sm:$0xf] %v389
    %401 = vst [vmem:[#allocation2 + $0xb0] sm:$0xf] %v390
    %402 = vst.msk [vmem:[#allocation2 + $0xb8] sm:$0xf] %vm166, %v384
    %v403 = vld [vmem:[#allocation4] sm:$0xff]
    %v404 = vld [vmem:[#allocation4 + $0x8] sm:$0xff]
    %v405 = vld [vmem:[#allocation4 + $0x10] sm:$0xff]
    %v409 = vcombine.low %v403, %v403
    %v410 = vcombine.low %v404, %v404
    %v411 = vcombine.low %v405, %v405
    %412 = vrot.lane.b32.xlu0 %v409, 91
    %v413 = vpop.permute.xlu0 %412
    %414 = vrot.lane.b32.xlu0 %v403, 91
    %v415 = vpop.permute.xlu0 %414
    %416 = vrot.lane.b32.xlu0 %v410, 91
    %v417 = vpop.permute.xlu0 %416
    %418 = vrot.lane.b32.xlu0 %v404, 91
    %v419 = vpop.permute.xlu0 %418
    %420 = vrot.lane.b32.xlu0 %v411, 91
    %v421 = vpop.permute.xlu0 %420
    %422 = vrot.lane.b32.xlu0 %v405, 91
    %v423 = vpop.permute.xlu0 %422
    %vm424 = vcmask 744448
    %v425 = vsel %vm424, %v413, %v415
    %v426 = vsel %vm424, %v415, %v417
    %v427 = vsel %vm424, %v417, %v419
    %v428 = vsel %vm424, %v419, %v421
    %v429 = vsel %vm424, %v421, %v423
    %436 = vst [vmem:[#allocation2 + $0x90] sm:$0xf0] %v425
    %437 = vst [vmem:[#allocation2 + $0x98] sm:$0xf0] %v426
    %438 = vst [vmem:[#allocation2 + $0xa0] sm:$0xf0] %v427
    %439 = vst [vmem:[#allocation2 + $0xa8] sm:$0xf0] %v428
    %440 = vst [vmem:[#allocation2 + $0xb0] sm:$0xf0] %v429
    %441 = vst.msk [vmem:[#allocation2 + $0xb8] sm:$0xf0] %vm206, %v423
    %v442 = vld [vmem:[#allocation4] sm:$0xff]
    %v443 = vld [vmem:[#allocation4 + $0x8] sm:$0xff]
    %v444 = vld [vmem:[#allocation4 + $0x10] sm:$0xff]
    %v448 = vcombine.high %v442, %v442
    %v449 = vcombine.high %v443, %v443
    %v450 = vcombine.high %v444, %v444
    %451 = vrot.lane.b32.xlu0 %v442, 90
    %v452 = vpop.permute.xlu0 %451
    %453 = vrot.lane.b32.xlu0 %v448, 90
    %v454 = vpop.permute.xlu0 %453
    %455 = vrot.lane.b32.xlu0 %v443, 90
    %v456 = vpop.permute.xlu0 %455
    %457 = vrot.lane.b32.xlu0 %v449, 90
    %v458 = vpop.permute.xlu0 %457
    %459 = vrot.lane.b32.xlu0 %v444, 90
    %v460 = vpop.permute.xlu0 %459
    %461 = vrot.lane.b32.xlu0 %v450, 90
    %v462 = vpop.permute.xlu0 %461
    %vm463 = vcmask 736256
    %v464 = vsel %vm463, %v452, %v454
    %v465 = vsel %vm463, %v454, %v456
    %v466 = vsel %vm463, %v456, %v458
    %v467 = vsel %vm463, %v458, %v460
    %v468 = vsel %vm463, %v460, %v462
    %475 = vst [vmem:[#allocation2 + $0xc0] sm:$0xf] %v464
    %476 = vst [vmem:[#allocation2 + $0xc8] sm:$0xf] %v465
    %477 = vst [vmem:[#allocation2 + $0xd0] sm:$0xf] %v466
    %478 = vst [vmem:[#allocation2 + $0xd8] sm:$0xf] %v467
    %479 = vst [vmem:[#allocation2 + $0xe0] sm:$0xf] %v468
    %480 = vst.msk [vmem:[#allocation2 + $0xe8] sm:$0xf] %vm166, %v462
    %v481 = vld [vmem:[#allocation7] sm:$0xff]
    %v482 = vld [vmem:[#allocation7 + $0x8] sm:$0xf]
    %v485 = vcombine.high %v481, %v481
    %v487 = vunpack.c.l.s4 1983009808
    %v488 = vunpack.c.0.s8 %v487
    %v489 = vlaneseq
    %v490 = vshrl.u32 %v489, 7
    %v491 = vsub.s32 %v488, %v490
    %v492 = vrot.slane %v481, %v491
    %v494 = vunpack.c.l.s4 1983009808
    %v495 = vunpack.c.0.s8 %v494
    %v496 = vlaneseq
    %v497 = vshrl.u32 %v496, 7
    %v498 = vsub.s32 %v495, %v497
    %v499 = vrot.slane %v485, %v498
    %v500 = vcombine.low %v492, %v492
    %v501 = vcombine.low %v499, %v499
    %v503 = vunpack.c.l.s4 1983009808
    %v504 = vunpack.c.0.s8 %v503
    %v505 = vlaneseq
    %v506 = vshrl.u32 %v505, 7
    %v507 = vsub.s32 %v504, %v506
    %v508 = vrot.slane %v482, %v507
    %v509 = vcombine.low %v508, %v508
    %516 = vst [vmem:[#allocation2 + $0xc0] sm:$0x30] %v500
    %517 = vst [vmem:[#allocation2 + $0xc8] sm:$0x30] %v492
    %518 = vst [vmem:[#allocation2 + $0xd0] sm:$0x30] %v501
    %519 = vst [vmem:[#allocation2 + $0xd8] sm:$0x30] %v499
    %520 = vst [vmem:[#allocation2 + $0xe0] sm:$0x30] %v509
    %vm521 = vcmask 62468
    %522 = vst.msk [vmem:[#allocation2 + $0xe8] sm:$0x30] %vm521, %v508
    %v523 = vld [vmem:[#allocation7] sm:$0xff]
    %v524 = vld [vmem:[#allocation7 + $0x8] sm:$0xf]
    %v527 = vcombine.low %v523, %v523
    %v529 = vunpack.c.l.s4 1983009808
    %v530 = vunpack.c.0.s8 %v529
    %v531 = vlaneseq
    %v532 = vshrl.u32 %v531, 7
    %v533 = vsub.s32 %v530, %v532
    %v534 = vrot.slane %v527, %v533
    %v536 = vunpack.c.l.s4 1983009808
    %v537 = vunpack.c.0.s8 %v536
    %v538 = vlaneseq
    %v539 = vshrl.u32 %v538, 7
    %v540 = vsub.s32 %v537, %v539
    %v541 = vrot.slane %v523, %v540
    %v542 = vcombine.low %v534, %v534
    %v543 = vcombine.low %v541, %v541
    %v544 = vcombine.low %v524, %v524
    %v546 = vunpack.c.l.s4 1983009808
    %v547 = vunpack.c.0.s8 %v546
    %v548 = vlaneseq
    %v549 = vshrl.u32 %v548, 7
    %v550 = vsub.s32 %v547, %v549
    %v551 = vrot.slane %v544, %v550
    %v552 = vcombine.low %v551, %v551
    %553 = vrot.lane.b32.xlu0 %v542, 127
    %v554 = vpop.permute.xlu0 %553
    %555 = vrot.lane.b32.xlu0 %v534, 127
    %v556 = vpop.permute.xlu0 %555
    %557 = vrot.lane.b32.xlu0 %v543, 127
    %v558 = vpop.permute.xlu0 %557
    %559 = vrot.lane.b32.xlu0 %v541, 127
    %v560 = vpop.permute.xlu0 %559
    %561 = vrot.lane.b32.xlu0 %v552, 127
    %v562 = vpop.permute.xlu0 %561
    %563 = vrot.lane.b32.xlu0 %v551, 127
    %v564 = vpop.permute.xlu0 %563
    %v565 = vsel %vm189, %v554, %v556
    %v566 = vsel %vm189, %v556, %v558
    %v567 = vsel %vm189, %v558, %v560
    %v568 = vsel %vm189, %v560, %v562
    %v569 = vsel %vm189, %v562, %v564
    %576 = vst [vmem:[#allocation2 + $0xc0] sm:$0xc0] %v565
    %577 = vst [vmem:[#allocation2 + $0xc8] sm:$0xc0] %v566
    %578 = vst [vmem:[#allocation2 + $0xd0] sm:$0xc0] %v567
    %579 = vst [vmem:[#allocation2 + $0xd8] sm:$0xc0] %v568
    %580 = vst [vmem:[#allocation2 + $0xe0] sm:$0xc0] %v569
    %vm581 = vcmask 64518
    %582 = vst.msk [vmem:[#allocation2 + $0xe8] sm:$0xc0] %vm581, %v564
    %v583 = vld [vmem:[#allocation7] sm:$0xff]
    %v584 = vld [vmem:[#allocation7 + $0x8] sm:$0xf]
    %v587 = vcombine.high %v583, %v583
    %v589 = vunpack.c.l.s4 1983009808
    %v590 = vunpack.c.0.s8 %v589
    %v591 = vlaneseq
    %v592 = vshrl.u32 %v591, 7
    %v593 = vsub.s32 %v590, %v592
    %v594 = vrot.slane %v583, %v593
    %v596 = vunpack.c.l.s4 1983009808
    %v597 = vunpack.c.0.s8 %v596
    %v598 = vlaneseq
    %v599 = vshrl.u32 %v598, 7
    %v600 = vsub.s32 %v597, %v599
    %v601 = vrot.slane %v587, %v600
    %v602 = vcombine.high %v594, %v594
    %v603 = vcombine.high %v601, %v601
    %v605 = vunpack.c.l.s4 1983009808
    %v606 = vunpack.c.0.s8 %v605
    %v607 = vlaneseq
    %v608 = vshrl.u32 %v607, 7
    %v609 = vsub.s32 %v606, %v608
    %v610 = vrot.slane %v584, %v609
    %v611 = vcombine.high %v610, %v610
    %612 = vrot.lane.b32.xlu0 %v594, 126
    %v613 = vpop.permute.xlu0 %612
    %614 = vrot.lane.b32.xlu0 %v602, 126
    %v615 = vpop.permute.xlu0 %614
    %616 = vrot.lane.b32.xlu0 %v601, 126
    %v617 = vpop.permute.xlu0 %616
    %618 = vrot.lane.b32.xlu0 %v603, 126
    %v619 = vpop.permute.xlu0 %618
    %620 = vrot.lane.b32.xlu0 %v610, 126
    %v621 = vpop.permute.xlu0 %620
    %622 = vrot.lane.b32.xlu0 %v611, 126
    %v623 = vpop.permute.xlu0 %622
    %v624 = vsel %vm229, %v613, %v615
    %v625 = vsel %vm229, %v615, %v617
    %v626 = vsel %vm229, %v617, %v619
    %v627 = vsel %vm229, %v619, %v621
    %v628 = vsel %vm229, %v621, %v623
    %635 = vst [vmem:[#allocation2 + $0xf0] sm:$0x3] %v624
    %636 = vst [vmem:[#allocation2 + $0xf8] sm:$0x3] %v625
    %637 = vst [vmem:[#allocation2 + $0x100] sm:$0x3] %v626
    %638 = vst [vmem:[#allocation2 + $0x108] sm:$0x3] %v627
    %639 = vst [vmem:[#allocation2 + $0x110] sm:$0x3] %v628
    %vm640 = vcmask 58368
    %641 = vst.msk [vmem:[#allocation2 + $0x118] sm:$0x3] %vm640, %v623
    %v642 = vld [vmem:[#allocation7] sm:$0xff]
    %v643 = vld [vmem:[#allocation7 + $0x8] sm:$0xf]
    %v646 = vcombine.low %v642, %v642
    %v648 = vunpack.c.l.s4 1983009808
    %v649 = vunpack.c.0.s8 %v648
    %v650 = vlaneseq
    %v651 = vshrl.u32 %v650, 7
    %v652 = vsub.s32 %v649, %v651
    %v653 = vrot.slane %v646, %v652
    %v655 = vunpack.c.l.s4 1983009808
    %v656 = vunpack.c.0.s8 %v655
    %v657 = vlaneseq
    %v658 = vshrl.u32 %v657, 7
    %v659 = vsub.s32 %v656, %v658
    %v660 = vrot.slane %v642, %v659
    %v661 = vcombine.high %v653, %v653
    %v662 = vcombine.high %v660, %v660
    %v663 = vcombine.low %v643, %v643
    %v665 = vunpack.c.l.s4 1983009808
    %v666 = vunpack.c.0.s8 %v665
    %v667 = vlaneseq
    %v668 = vshrl.u32 %v667, 7
    %v669 = vsub.s32 %v666, %v668
    %v670 = vrot.slane %v663, %v669
    %v671 = vcombine.high %v670, %v670
    %672 = vrot.lane.b32.xlu0 %v653, 110
    %v673 = vpop.permute.xlu0 %672
    %674 = vrot.lane.b32.xlu0 %v661, 110
    %v675 = vpop.permute.xlu0 %674
    %676 = vrot.lane.b32.xlu0 %v660, 110
    %v677 = vpop.permute.xlu0 %676
    %678 = vrot.lane.b32.xlu0 %v662, 110
    %v679 = vpop.permute.xlu0 %678
    %680 = vrot.lane.b32.xlu0 %v670, 110
    %v681 = vpop.permute.xlu0 %680
    %682 = vrot.lane.b32.xlu0 %v671, 110
    %v683 = vpop.permute.xlu0 %682
    %v684 = vsel %vm268, %v673, %v675
    %v685 = vsel %vm268, %v675, %v677
    %v686 = vsel %vm268, %v677, %v679
    %v687 = vsel %vm268, %v679, %v681
    %v688 = vsel %vm268, %v681, %v683
    %695 = vst [vmem:[#allocation2 + $0xf0] sm:$0xc] %v684
    %696 = vst [vmem:[#allocation2 + $0xf8] sm:$0xc] %v685
    %697 = vst [vmem:[#allocation2 + $0x100] sm:$0xc] %v686
    %698 = vst [vmem:[#allocation2 + $0x108] sm:$0xc] %v687
    %699 = vst [vmem:[#allocation2 + $0x110] sm:$0xc] %v688
    %vm700 = vcmask 60418
    %701 = vst.msk [vmem:[#allocation2 + $0x118] sm:$0xc] %vm700, %v683
    %v702 = vld [vmem:[#allocation7] sm:$0xff]
    %v703 = vld [vmem:[#allocation7 + $0x8] sm:$0xf]
    %v706 = vcombine.high %v702, %v702
    %v708 = vunpack.c.l.s4 1983009808
    %v709 = vunpack.c.0.s8 %v708
    %v710 = vlaneseq
    %v711 = vshrl.u32 %v710, 7
    %v712 = vsub.s32 %v709, %v711
    %v713 = vrot.slane %v702, %v712
    %v715 = vunpack.c.l.s4 1983009808
    %v716 = vunpack.c.0.s8 %v715
    %v717 = vlaneseq
    %v718 = vshrl.u32 %v717, 7
    %v719 = vsub.s32 %v716, %v718
    %v720 = vrot.slane %v706, %v719
    %v721 = vcombine.low %v713, %v713
    %v722 = vcombine.low %v720, %v720
    %v724 = vunpack.c.l.s4 1983009808
    %v725 = vunpack.c.0.s8 %v724
    %v726 = vlaneseq
    %v727 = vshrl.u32 %v726, 7
    %v728 = vsub.s32 %v725, %v727
    %v729 = vrot.slane %v703, %v728
    %v730 = vcombine.low %v729, %v729
    %731 = vrot.lane.b32.xlu0 %v721, 109
    %v732 = vpop.permute.xlu0 %731
    %733 = vrot.lane.b32.xlu0 %v713, 109
    %v734 = vpop.permute.xlu0 %733
    %735 = vrot.lane.b32.xlu0 %v722, 109
    %v736 = vpop.permute.xlu0 %735
    %737 = vrot.lane.b32.xlu0 %v720, 109
    %v738 = vpop.permute.xlu0 %737
    %739 = vrot.lane.b32.xlu0 %v730, 109
    %v740 = vpop.permute.xlu0 %739
    %741 = vrot.lane.b32.xlu0 %v729, 109
    %v742 = vpop.permute.xlu0 %741
    %v743 = vsel %vm307, %v732, %v734
    %v744 = vsel %vm307, %v734, %v736
    %v745 = vsel %vm307, %v736, %v738
    %v746 = vsel %vm307, %v738, %v740
    %v747 = vsel %vm307, %v740, %v742
    %754 = vst [vmem:[#allocation2 + $0xf0] sm:$0x30] %v743
    %755 = vst [vmem:[#allocation2 + $0xf8] sm:$0x30] %v744
    %756 = vst [vmem:[#allocation2 + $0x100] sm:$0x30] %v745
    %757 = vst [vmem:[#allocation2 + $0x108] sm:$0x30] %v746
    %758 = vst [vmem:[#allocation2 + $0x110] sm:$0x30] %v747
    %759 = vst.msk [vmem:[#allocation2 + $0x118] sm:$0x30] %vm521, %v742
    %v760 = vld [vmem:[#allocation7] sm:$0xff]
    %v761 = vld [vmem:[#allocation7 + $0x8] sm:$0xf]
    %v764 = vcombine.low %v760, %v760
    %v766 = vunpack.c.l.s4 1983009808
    %v767 = vunpack.c.0.s8 %v766
    %v768 = vlaneseq
    %v769 = vshrl.u32 %v768, 7
    %v770 = vsub.s32 %v767, %v769
    %v771 = vrot.slane %v764, %v770
    %v773 = vunpack.c.l.s4 1983009808
    %v774 = vunpack.c.0.s8 %v773
    %v775 = vlaneseq
    %v776 = vshrl.u32 %v775, 7
    %v777 = vsub.s32 %v774, %v776
    %v778 = vrot.slane %v760, %v777
    %v779 = vcombine.low %v771, %v771
    %v780 = vcombine.low %v778, %v778
    %v781 = vcombine.low %v761, %v761
    %v783 = vunpack.c.l.s4 1983009808
    %v784 = vunpack.c.0.s8 %v783
    %v785 = vlaneseq
    %v786 = vshrl.u32 %v785, 7
    %v787 = vsub.s32 %v784, %v786
    %v788 = vrot.slane %v781, %v787
    %v789 = vcombine.low %v788, %v788
    %790 = vrot.lane.b32.xlu0 %v779, 108
    %v791 = vpop.permute.xlu0 %790
    %792 = vrot.lane.b32.xlu0 %v771, 108
    %v793 = vpop.permute.xlu0 %792
    %794 = vrot.lane.b32.xlu0 %v780, 108
    %v795 = vpop.permute.xlu0 %794
    %796 = vrot.lane.b32.xlu0 %v778, 108
    %v797 = vpop.permute.xlu0 %796
    %798 = vrot.lane.b32.xlu0 %v789, 108
    %v799 = vpop.permute.xlu0 %798
    %800 = vrot.lane.b32.xlu0 %v788, 108
    %v801 = vpop.permute.xlu0 %800
    %v802 = vsel %vm346, %v791, %v793
    %v803 = vsel %vm346, %v793, %v795
    %v804 = vsel %vm346, %v795, %v797
    %v805 = vsel %vm346, %v797, %v799
    %v806 = vsel %vm346, %v799, %v801
    %813 = vst [vmem:[#allocation2 + $0xf0] sm:$0xc0] %v802
    %814 = vst [vmem:[#allocation2 + $0xf8] sm:$0xc0] %v803
    %815 = vst [vmem:[#allocation2 + $0x100] sm:$0xc0] %v804
    %816 = vst [vmem:[#allocation2 + $0x108] sm:$0xc0] %v805
    %817 = vst [vmem:[#allocation2 + $0x110] sm:$0xc0] %v806
    %818 = vst.msk [vmem:[#allocation2 + $0x118] sm:$0xc0] %vm581, %v801
    %v819 = vld [vmem:[#allocation7] sm:$0xff]
    %v820 = vld [vmem:[#allocation7 + $0x8] sm:$0xf]
    %v823 = vcombine.high %v819, %v819
    %v825 = vunpack.c.l.s4 1983009808
    %v826 = vunpack.c.0.s8 %v825
    %v827 = vlaneseq
    %v828 = vshrl.u32 %v827, 7
    %v829 = vsub.s32 %v826, %v828
    %v830 = vrot.slane %v819, %v829
    %v832 = vunpack.c.l.s4 1983009808
    %v833 = vunpack.c.0.s8 %v832
    %v834 = vlaneseq
    %v835 = vshrl.u32 %v834, 7
    %v836 = vsub.s32 %v833, %v835
    %v837 = vrot.slane %v823, %v836
    %v838 = vcombine.high %v830, %v830
    %v839 = vcombine.high %v837, %v837
    %v841 = vunpack.c.l.s4 1983009808
    %v842 = vunpack.c.0.s8 %v841
    %v843 = vlaneseq
    %v844 = vshrl.u32 %v843, 7
    %v845 = vsub.s32 %v842, %v844
    %v846 = vrot.slane %v820, %v845
    %v847 = vcombine.high %v846, %v846
    %848 = vrot.lane.b32.xlu0 %v830, 92
    %v849 = vpop.permute.xlu0 %848
    %850 = vrot.lane.b32.xlu0 %v838, 92
    %v851 = vpop.permute.xlu0 %850
    %852 = vrot.lane.b32.xlu0 %v837, 92
    %v853 = vpop.permute.xlu0 %852
    %854 = vrot.lane.b32.xlu0 %v839, 92
    %v855 = vpop.permute.xlu0 %854
    %856 = vrot.lane.b32.xlu0 %v846, 92
    %v857 = vpop.permute.xlu0 %856
    %858 = vrot.lane.b32.xlu0 %v847, 92
    %v859 = vpop.permute.xlu0 %858
    %v860 = vsel %vm385, %v849, %v851
    %v861 = vsel %vm385, %v851, %v853
    %v862 = vsel %vm385, %v853, %v855
    %v863 = vsel %vm385, %v855, %v857
    %v864 = vsel %vm385, %v857, %v859
    %871 = vst [vmem:[#allocation2 + $0x120] sm:$0x3] %v860
    %872 = vst [vmem:[#allocation2 + $0x128] sm:$0x3] %v861
    %873 = vst [vmem:[#allocation2 + $0x130] sm:$0x3] %v862
    %874 = vst [vmem:[#allocation2 + $0x138] sm:$0x3] %v863
    %875 = vst [vmem:[#allocation2 + $0x140] sm:$0x3] %v864
    %876 = vst.msk [vmem:[#allocation2 + $0x148] sm:$0x3] %vm640, %v859
    %v877 = vld [vmem:[#allocation7] sm:$0xff]
    %v878 = vld [vmem:[#allocation7 + $0x8] sm:$0xf]
    %v881 = vcombine.low %v877, %v877
    %v883 = vunpack.c.l.s4 1983009808
    %v884 = vunpack.c.0.s8 %v883
    %v885 = vlaneseq
    %v886 = vshrl.u32 %v885, 7
    %v887 = vsub.s32 %v884, %v886
    %v888 = vrot.slane %v881, %v887
    %v890 = vunpack.c.l.s4 1983009808
    %v891 = vunpack.c.0.s8 %v890
    %v892 = vlaneseq
    %v893 = vshrl.u32 %v892, 7
    %v894 = vsub.s32 %v891, %v893
    %v895 = vrot.slane %v877, %v894
    %v896 = vcombine.high %v888, %v888
    %v897 = vcombine.high %v895, %v895
    %v898 = vcombine.low %v878, %v878
    %v900 = vunpack.c.l.s4 1983009808
    %v901 = vunpack.c.0.s8 %v900
    %v902 = vlaneseq
    %v903 = vshrl.u32 %v902, 7
    %v904 = vsub.s32 %v901, %v903
    %v905 = vrot.slane %v898, %v904
    %v906 = vcombine.high %v905, %v905
    %907 = vrot.lane.b32.xlu0 %v888, 91
    %v908 = vpop.permute.xlu0 %907
    %909 = vrot.lane.b32.xlu0 %v896, 91
    %v910 = vpop.permute.xlu0 %909
    %911 = vrot.lane.b32.xlu0 %v895, 91
    %v912 = vpop.permute.xlu0 %911
    %913 = vrot.lane.b32.xlu0 %v897, 91
    %v914 = vpop.permute.xlu0 %913
    %915 = vrot.lane.b32.xlu0 %v905, 91
    %v916 = vpop.permute.xlu0 %915
    %917 = vrot.lane.b32.xlu0 %v906, 91
    %v918 = vpop.permute.xlu0 %917
    %v919 = vsel %vm424, %v908, %v910
    %v920 = vsel %vm424, %v910, %v912
    %v921 = vsel %vm424, %v912, %v914
    %v922 = vsel %vm424, %v914, %v916
    %v923 = vsel %vm424, %v916, %v918
    %930 = vst [vmem:[#allocation2 + $0x120] sm:$0xc] %v919
    %931 = vst [vmem:[#allocation2 + $0x128] sm:$0xc] %v920
    %932 = vst [vmem:[#allocation2 + $0x130] sm:$0xc] %v921
    %933 = vst [vmem:[#allocation2 + $0x138] sm:$0xc] %v922
    %934 = vst [vmem:[#allocation2 + $0x140] sm:$0xc] %v923
    %935 = vst.msk [vmem:[#allocation2 + $0x148] sm:$0xc] %vm700, %v918
    %v936 = vld [vmem:[#allocation7] sm:$0xff]
    %v937 = vld [vmem:[#allocation7 + $0x8] sm:$0xf]
    %v940 = vcombine.high %v936, %v936
    %v942 = vunpack.c.l.s4 1983009808
    %v943 = vunpack.c.0.s8 %v942
    %v944 = vlaneseq
    %v945 = vshrl.u32 %v944, 7
    %v946 = vsub.s32 %v943, %v945
    %v947 = vrot.slane %v936, %v946
    %v949 = vunpack.c.l.s4 1983009808
    %v950 = vunpack.c.0.s8 %v949
    %v951 = vlaneseq
    %v952 = vshrl.u32 %v951, 7
    %v953 = vsub.s32 %v950, %v952
    %v954 = vrot.slane %v940, %v953
    %v955 = vcombine.low %v947, %v947
    %v956 = vcombine.low %v954, %v954
    %v958 = vunpack.c.l.s4 1983009808
    %v959 = vunpack.c.0.s8 %v958
    %v960 = vlaneseq
    %v961 = vshrl.u32 %v960, 7
    %v962 = vsub.s32 %v959, %v961
    %v963 = vrot.slane %v937, %v962
    %v964 = vcombine.low %v963, %v963
    %965 = vrot.lane.b32.xlu0 %v955, 90
    %v966 = vpop.permute.xlu0 %965
    %967 = vrot.lane.b32.xlu0 %v947, 90
    %v968 = vpop.permute.xlu0 %967
    %969 = vrot.lane.b32.xlu0 %v956, 90
    %v970 = vpop.permute.xlu0 %969
    %971 = vrot.lane.b32.xlu0 %v954, 90
    %v972 = vpop.permute.xlu0 %971
    %973 = vrot.lane.b32.xlu0 %v964, 90
    %v974 = vpop.permute.xlu0 %973
    %975 = vrot.lane.b32.xlu0 %v963, 90
    %v976 = vpop.permute.xlu0 %975
    %v977 = vsel %vm463, %v966, %v968
    %v978 = vsel %vm463, %v968, %v970
    %v979 = vsel %vm463, %v970, %v972
    %v980 = vsel %vm463, %v972, %v974
    %v981 = vsel %vm463, %v974, %v976
    %988 = vst [vmem:[#allocation2 + $0x120] sm:$0x30] %v977
    %989 = vst [vmem:[#allocation2 + $0x128] sm:$0x30] %v978
    %990 = vst [vmem:[#allocation2 + $0x130] sm:$0x30] %v979
    %991 = vst [vmem:[#allocation2 + $0x138] sm:$0x30] %v980
    %992 = vst [vmem:[#allocation2 + $0x140] sm:$0x30] %v981
    %993 = vst.msk [vmem:[#allocation2 + $0x148] sm:$0x30] %vm521, %v976
    %v994 = vld [vmem:[#allocation10] sm:$0xf]
    %v995 = vld [vmem:[#allocation2] sm:$0xff]
    %v996 = vld [vmem:[#allocation2 + $0x8] sm:$0xff]
    %v997 = vld [vmem:[#allocation2 + $0x10] sm:$0xff]
    %v998 = vld [vmem:[#allocation2 + $0x18] sm:$0xff]
    %v999 = vld [vmem:[#allocation2 + $0x20] sm:$0xff]
    %v1000 = vld [vmem:[#allocation2 + $0x28] sm:$0xff]
    %v1001 = vld [vmem:[#allocation2 + $0x30] sm:$0xff]
    %v1002 = vld [vmem:[#allocation2 + $0x38] sm:$0xff]
    %v1003 = vld [vmem:[#allocation2 + $0x40] sm:$0xff]
    %v1004 = vld [vmem:[#allocation2 + $0x48] sm:$0xff]
    %v1005 = vld [vmem:[#allocation2 + $0x50] sm:$0xff]
    %v1006 = vld [vmem:[#allocation2 + $0x58] sm:$0xff]
    %v1007 = vld [vmem:[#allocation2 + $0x60] sm:$0xff]
    %v1008 = vld [vmem:[#allocation2 + $0x68] sm:$0xff]
    %v1009 = vld [vmem:[#allocation2 + $0x70] sm:$0xff]
    %v1010 = vld [vmem:[#allocation2 + $0x78] sm:$0xff]
    %v1011 = vld [vmem:[#allocation2 + $0x80] sm:$0xff]
    %v1012 = vld [vmem:[#allocation2 + $0x88] sm:$0xff]
    %v1013 = vld [vmem:[#allocation2 + $0x90] sm:$0xff]
    %v1014 = vld [vmem:[#allocation2 + $0x98] sm:$0xff]
    %v1015 = vld [vmem:[#allocation2 + $0xa0] sm:$0xff]
    %v1016 = vld [vmem:[#allocation2 + $0xa8] sm:$0xff]
    %v1017 = vld [vmem:[#allocation2 + $0xb0] sm:$0xff]
    %v1018 = vld [vmem:[#allocation2 + $0xb8] sm:$0xff]
    %v1019 = vld [vmem:[#allocation2 + $0xc0] sm:$0xff]
    %v1020 = vld [vmem:[#allocation2 + $0xc8] sm:$0xff]
    %v1021 = vld [vmem:[#allocation2 + $0xd0] sm:$0xff]
    %v1022 = vld [vmem:[#allocation2 + $0xd8] sm:$0xff]
    %v1023 = vld [vmem:[#allocation2 + $0xe0] sm:$0xff]
    %v1024 = vld [vmem:[#allocation2 + $0xe8] sm:$0xff]
    %v1025 = vld [vmem:[#allocation2 + $0xf0] sm:$0xff]
    %v1026 = vld [vmem:[#allocation2 + $0xf8] sm:$0xff]
    %v1027 = vld [vmem:[#allocation2 + $0x100] sm:$0xff]
    %v1028 = vld [vmem:[#allocation2 + $0x108] sm:$0xff]
    %v1029 = vld [vmem:[#allocation2 + $0x110] sm:$0xff]
    %v1030 = vld [vmem:[#allocation2 + $0x118] sm:$0xff]
    %v1031 = vld [vmem:[#allocation2 + $0x120] sm:$0x3f]
    %v1032 = vld [vmem:[#allocation2 + $0x128] sm:$0x3f]
    %v1033 = vld [vmem:[#allocation2 + $0x130] sm:$0x3f]
    %v1034 = vld [vmem:[#allocation2 + $0x138] sm:$0x3f]
    %v1035 = vld [vmem:[#allocation2 + $0x140] sm:$0x3f]
    %v1036 = vld [vmem:[#allocation2 + $0x148] sm:$0x3f]
    %vm1037 = vcmask 441344
    %v1039 = vsel %vm1037, %v994, 0
    %vm1041 = vcmask 1045504
    %v1043 = vsel %vm1041, %v1031, 0
    %v1046 = vsel %vm1041, %v1032, 0
    %v1049 = vsel %vm1041, %v1033, 0
    %v1052 = vsel %vm1041, %v1034, 0
    %v1055 = vsel %vm1041, %v1035, 0
    %v1058 = vsel %vm1041, %v1036, 0
    %1060 = vmatprep.subr.mxu0 %v996
    %1061 = vmatpush1.msra.mxu0 %v995
    %1062 = vmatprep.subr.mxu0 %v1002
    %1063 = vmatpush1.msra.mxu0 %v1001
    %1064 = vmatprep.subr.mxu0 %v1008
    %1065 = vmatpush1.msra.mxu0 %v1007
    %1066 = vmatprep.subr.mxu0 %v1014
    %1067 = vmatpush1.msra.mxu0 %v1013
    %1068 = vmatprep.subr.mxu0 %v1020
    %1069 = vmatpush1.msra.mxu0 %v1019
    %1070 = vmatprep.subr.mxu0 %v1026
    %1071 = vmatpush1.msra.mxu0 %v1025
    %1072 = vmatprep.subr.mxu0 %v1046
    %1073 = vmatpush1.msra.mxu0 %v1043
    %1074 = vmatprep.subr.mxu0 0.0
    %1075 = vmatpush1.msra.mxu0 0.0
    %1076 = vmatprep.subr.mxu0 0.0
    %1077 = vmatpush1.msra.mxu0 0.0
    %1078 = vmatprep.subr.mxu0 0.0
    %1079 = vmatpush1.msra.mxu0 0.0
    %1080 = vmatprep.subr.mxu0 0.0
    %1081 = vmatpush1.msra.mxu0 0.0
    %1082 = vmatprep.subr.mxu0 0.0
    %1083 = vmatpush1.msra.mxu0 0.0
    %1084 = vmatprep.subr.mxu0 0.0
    %1085 = vmatpush1.msra.mxu0 0.0
    %1086 = vmatprep.subr.mxu0 0.0
    %1087 = vmatpush1.msra.mxu0 0.0
    %1088 = vmatprep.subr.mxu0 0.0
    %1089 = vmatpush1.msra.mxu0 0.0
    %1090 = vmatprep.subr.mxu0 0.0
    %1091 = vmatpush1.msra.mxu0 0.0
    %1092 = vmatprep.subr.mxu0 0.0
    %1093 = vmatpush1.msra.mxu0 0.0
    %1094 = vmatprep.subr.mxu0 0.0
    %1095 = vmatpush1.msra.mxu0 0.0
    %1096 = vmatprep.subr.mxu0 0.0
    %1097 = vmatpush1.msra.mxu0 0.0
    %1098 = vmatprep.subr.mxu0 0.0
    %1099 = vmatpush1.msra.mxu0 0.0
    %1100 = vmatprep.subr.mxu0 0.0
    %1101 = vmatpush1.msra.mxu0 0.0
    %1102 = vmatprep.subr.mxu0 0.0
    %1103 = vmatpush1.msra.mxu0 0.0
    %1104 = vmatprep.subr.mxu0 0.0
    %1105 = vmatpush1.msra.mxu0 0.0
    %1106 = vmatprep.subr.mxu0 0.0
    %1107 = vmatpush1.msra.mxu0 0.0
    %1108 = vmatprep.subr.mxu0 0.0
    %1109 = vmatpush1.msra.mxu0 0.0
    %1110 = vmatprep.subr.mxu0 0.0
    %1111 = vmatpush1.msra.mxu0 0.0
    %1112 = vmatprep.subr.mxu0 0.0
    %1113 = vmatpush1.msra.mxu0 0.0
    %1114 = vmatprep.subr.mxu0 0.0
    %1115 = vmatpush1.msra.mxu0 0.0
    %1116 = vmatprep.subr.mxu0 0.0
    %1117 = vmatpush1.msra.mxu0 0.0
    %1118 = vmatprep.subr.mxu0 0.0
    %1119 = vmatpush1.msra.mxu0 0.0
    %1120 = vmatprep.subr.mxu0 0.0
    %1121 = vmatpush1.msra.mxu0 0.0
    %1122 = vmatprep.subr.mxu0 0.0
    %1123 = vmatpush1.msra.mxu0 0.0
    %1124 = vmatprep.mubr.f32.mxu0 0.0
    %1125 = vmatmul.mubr.f32.gmra.mrb[0].mxu0 %v1039
    %v1126 = vpop.f32.mrb[0].mxu0
    %v1127 = vadd.f32 0.0, %v1126
    %v1128 = vpop.f32.mrb[0].mxu0
    %v1129 = vadd.f32 0.0, %v1128
    %1130 = vdwg.mxu0
    %1131 = vmatprep.subr.mxu0 %v998
    %1132 = vmatpush1.msra.mxu0 %v997
    %1133 = vmatprep.subr.mxu0 %v1004
    %1134 = vmatpush1.msra.mxu0 %v1003
    %1135 = vmatprep.subr.mxu0 %v1010
    %1136 = vmatpush1.msra.mxu0 %v1009
    %1137 = vmatprep.subr.mxu0 %v1016
    %1138 = vmatpush1.msra.mxu0 %v1015
    %1139 = vmatprep.subr.mxu0 %v1022
    %1140 = vmatpush1.msra.mxu0 %v1021
    %1141 = vmatprep.subr.mxu0 %v1028
    %1142 = vmatpush1.msra.mxu0 %v1027
    %1143 = vmatprep.subr.mxu0 %v1052
    %1144 = vmatpush1.msra.mxu0 %v1049
    %1145 = vmatprep.subr.mxu0 0.0
    %1146 = vmatpush1.msra.mxu0 0.0
    %1147 = vmatprep.subr.mxu0 0.0
    %1148 = vmatpush1.msra.mxu0 0.0
    %1149 = vmatprep.subr.mxu0 0.0
    %1150 = vmatpush1.msra.mxu0 0.0
    %1151 = vmatprep.subr.mxu0 0.0
    %1152 = vmatpush1.msra.mxu0 0.0
    %1153 = vmatprep.subr.mxu0 0.0
    %1154 = vmatpush1.msra.mxu0 0.0
    %1155 = vmatprep.subr.mxu0 0.0
    %1156 = vmatpush1.msra.mxu0 0.0
    %1157 = vmatprep.subr.mxu0 0.0
    %1158 = vmatpush1.msra.mxu0 0.0
    %1159 = vmatprep.subr.mxu0 0.0
    %1160 = vmatpush1.msra.mxu0 0.0
    %1161 = vmatprep.subr.mxu0 0.0
    %1162 = vmatpush1.msra.mxu0 0.0
    %1163 = vmatprep.subr.mxu0 0.0
    %1164 = vmatpush1.msra.mxu0 0.0
    %1165 = vmatprep.subr.mxu0 0.0
    %1166 = vmatpush1.msra.mxu0 0.0
    %1167 = vmatprep.subr.mxu0 0.0
    %1168 = vmatpush1.msra.mxu0 0.0
    %1169 = vmatprep.subr.mxu0 0.0
    %1170 = vmatpush1.msra.mxu0 0.0
    %1171 = vmatprep.subr.mxu0 0.0
    %1172 = vmatpush1.msra.mxu0 0.0
    %1173 = vmatprep.subr.mxu0 0.0
    %1174 = vmatpush1.msra.mxu0 0.0
    %1175 = vmatprep.subr.mxu0 0.0
    %1176 = vmatpush1.msra.mxu0 0.0
    %1177 = vmatprep.subr.mxu0 0.0
    %1178 = vmatpush1.msra.mxu0 0.0
    %1179 = vmatprep.subr.mxu0 0.0
    %1180 = vmatpush1.msra.mxu0 0.0
    %1181 = vmatprep.subr.mxu0 0.0
    %1182 = vmatpush1.msra.mxu0 0.0
    %1183 = vmatprep.subr.mxu0 0.0
    %1184 = vmatpush1.msra.mxu0 0.0
    %1185 = vmatprep.subr.mxu0 0.0
    %1186 = vmatpush1.msra.mxu0 0.0
    %1187 = vmatprep.subr.mxu0 0.0
    %1188 = vmatpush1.msra.mxu0 0.0
    %1189 = vmatprep.subr.mxu0 0.0
    %1190 = vmatpush1.msra.mxu0 0.0
    %1191 = vmatprep.subr.mxu0 0.0
    %1192 = vmatpush1.msra.mxu0 0.0
    %1193 = vmatprep.subr.mxu0 0.0
    %1194 = vmatpush1.msra.mxu0 0.0
    %1195 = vmatprep.mubr.f32.mxu0 0.0
    %1196 = vmatmul.mubr.f32.gmra.mrb[0].mxu0 %v1039
    %v1197 = vpop.f32.mrb[0].mxu0
    %v1198 = vadd.f32 0.0, %v1197
    %v1199 = vpop.f32.mrb[0].mxu0
    %v1200 = vadd.f32 0.0, %v1199
    %1201 = vdwg.mxu0
    %1202 = vmatprep.subr.mxu0 %v1000
    %1203 = vmatpush1.msra.mxu0 %v999
    %1204 = vmatprep.subr.mxu0 %v1006
    %1205 = vmatpush1.msra.mxu0 %v1005
    %1206 = vmatprep.subr.mxu0 %v1012
    %1207 = vmatpush1.msra.mxu0 %v1011
    %1208 = vmatprep.subr.mxu0 %v1018
    %1209 = vmatpush1.msra.mxu0 %v1017
    %1210 = vmatprep.subr.mxu0 %v1024
    %1211 = vmatpush1.msra.mxu0 %v1023
    %1212 = vmatprep.subr.mxu0 %v1030
    %1213 = vmatpush1.msra.mxu0 %v1029
    %1214 = vmatprep.subr.mxu0 %v1058
    %1215 = vmatpush1.msra.mxu0 %v1055
    %1216 = vmatprep.subr.mxu0 0.0
    %1217 = vmatpush1.msra.mxu0 0.0
    %1218 = vmatprep.subr.mxu0 0.0
    %1219 = vmatpush1.msra.mxu0 0.0
    %1220 = vmatprep.subr.mxu0 0.0
    %1221 = vmatpush1.msra.mxu0 0.0
    %1222 = vmatprep.subr.mxu0 0.0
    %1223 = vmatpush1.msra.mxu0 0.0
    %1224 = vmatprep.subr.mxu0 0.0
    %1225 = vmatpush1.msra.mxu0 0.0
    %1226 = vmatprep.subr.mxu0 0.0
    %1227 = vmatpush1.msra.mxu0 0.0
    %1228 = vmatprep.subr.mxu0 0.0
    %1229 = vmatpush1.msra.mxu0 0.0
    %1230 = vmatprep.subr.mxu0 0.0
    %1231 = vmatpush1.msra.mxu0 0.0
    %1232 = vmatprep.subr.mxu0 0.0
    %1233 = vmatpush1.msra.mxu0 0.0
    %1234 = vmatprep.subr.mxu0 0.0
    %1235 = vmatpush1.msra.mxu0 0.0
    %1236 = vmatprep.subr.mxu0 0.0
    %1237 = vmatpush1.msra.mxu0 0.0
    %1238 = vmatprep.subr.mxu0 0.0
    %1239 = vmatpush1.msra.mxu0 0.0
    %1240 = vmatprep.subr.mxu0 0.0
    %1241 = vmatpush1.msra.mxu0 0.0
    %1242 = vmatprep.subr.mxu0 0.0
    %1243 = vmatpush1.msra.mxu0 0.0
    %1244 = vmatprep.subr.mxu0 0.0
    %1245 = vmatpush1.msra.mxu0 0.0
    %1246 = vmatprep.subr.mxu0 0.0
    %1247 = vmatpush1.msra.mxu0 0.0
    %1248 = vmatprep.subr.mxu0 0.0
    %1249 = vmatpush1.msra.mxu0 0.0
    %1250 = vmatprep.subr.mxu0 0.0
    %1251 = vmatpush1.msra.mxu0 0.0
    %1252 = vmatprep.subr.mxu0 0.0
    %1253 = vmatpush1.msra.mxu0 0.0
    %1254 = vmatprep.subr.mxu0 0.0
    %1255 = vmatpush1.msra.mxu0 0.0
    %1256 = vmatprep.subr.mxu0 0.0
    %1257 = vmatpush1.msra.mxu0 0.0
    %1258 = vmatprep.subr.mxu0 0.0
    %1259 = vmatpush1.msra.mxu0 0.0
    %1260 = vmatprep.subr.mxu0 0.0
    %1261 = vmatpush1.msra.mxu0 0.0
    %1262 = vmatprep.subr.mxu0 0.0
    %1263 = vmatpush1.msra.mxu0 0.0
    %1264 = vmatprep.subr.mxu0 0.0
    %1265 = vmatpush1.msra.mxu0 0.0
    %1266 = vmatprep.mubr.f32.mxu0 0.0
    %1267 = vmatmul.mubr.f32.gmra.mrb[0].mxu0 %v1039
    %v1268 = vpop.f32.mrb[0].mxu0
    %v1269 = vadd.f32 0.0, %v1268
    %v1270 = vpop.f32.mrb[0].mxu0
    %v1271 = vadd.f32 0.0, %v1270
    %1272 = vdwg.mxu0
    %v1273 = vsel %vm143, 1, 0
    %v1274 = vsel %vm144, 1, 0
    %v1275 = vsel %vm145, 1, 0
    %v1276 = vsel %vm146, 1, 0
    %v1277 = vsel %vm147, 1, 0
    %v1278 = vsel %vm148, 1, 0
    %v1279 = vlaneseq
    %v1280 = vshrl.u32 %v1279, 7
    %v1281 = vsub.s32 0, %v1280
    %v1282 = vrot.slane %v1273, %v1281
    %v1283 = vlaneseq
    %v1284 = vshrl.u32 %v1283, 7
    %v1285 = vsub.s32 0, %v1284
    %v1286 = vrot.slane %v1274, %v1285
    %v1287 = vlaneseq
    %v1288 = vshrl.u32 %v1287, 7
    %v1289 = vsub.s32 0, %v1288
    %v1290 = vrot.slane %v1275, %v1289
    %v1291 = vlaneseq
    %v1292 = vshrl.u32 %v1291, 7
    %v1293 = vsub.s32 0, %v1292
    %v1294 = vrot.slane %v1276, %v1293
    %v1295 = vlaneseq
    %v1296 = vshrl.u32 %v1295, 7
    %v1297 = vsub.s32 0, %v1296
    %v1298 = vrot.slane %v1277, %v1297
    %v1299 = vlaneseq
    %v1300 = vshrl.u32 %v1299, 7
    %v1301 = vsub.s32 0, %v1300
    %v1302 = vrot.slane %v1278, %v1301
    %vm1303 = vcmp.eq.s32.totalorder %v1282, 1
    %vm1304 = vcmp.eq.s32.totalorder %v1286, 1
    %vm1305 = vcmp.eq.s32.totalorder %v1290, 1
    %vm1306 = vcmp.eq.s32.totalorder %v1294, 1
    %vm1307 = vcmp.eq.s32.totalorder %v1298, 1
    %vm1308 = vcmp.eq.s32.totalorder %v1302, 1
    %v1309 = vsel %vm1303, %v1127, 0.0
    %v1310 = vsel %vm1304, %v1129, 0.0
    %v1311 = vsel %vm1305, %v1198, 0.0
    %v1312 = vsel %vm1306, %v1200, 0.0
    %v1313 = vsel %vm1307, %v1269, 0.0
    %v1314 = vsel %vm1308, %v1271, 0.0
    %vm1315 = vcmask 1043456
    %v1316 = vsel %vm1315, %v1309, 0.0
    %v1317 = vsel %vm1315, %v1310, 0.0
    %v1318 = vadd.f32 %v1316, %v1317
    %v1319 = vsel %vm1315, %v1311, 0.0
    %v1320 = vadd.f32 %v1318, %v1319
    %v1321 = vsel %vm1315, %v1312, 0.0
    %v1322 = vadd.f32 %v1320, %v1321
    %v1323 = vsel %vm1315, %v1313, 0.0
    %v1324 = vadd.f32 %v1322, %v1323
    %v1325 = vsel %vm166, %v1314, 0.0
    %v1326 = vadd.f32 %v1324, %v1325
    %1327 = vadd.xlane.f32.xlu0 %v1326
    %v1328 = vpop.xlane.xlu0 %1327
    %v1329 = vmul.f32 %v1328, 0.001953125
    %v1330 = vsub.f32 %v1127, %v1329
    %v1331 = vsub.f32 %v1129, %v1329
    %v1332 = vsub.f32 %v1198, %v1329
    %v1333 = vsub.f32 %v1200, %v1329
    %v1334 = vsub.f32 %v1269, %v1329
    %v1335 = vsub.f32 %v1271, %v1329
    %v1336 = vmul.f32 %v1330, %v1330
    %v1337 = vmul.f32 %v1331, %v1331
    %v1338 = vmul.f32 %v1332, %v1332
    %v1339 = vmul.f32 %v1333, %v1333
    %v1340 = vmul.f32 %v1334, %v1334
    %v1341 = vmul.f32 %v1335, %v1335
    %v1342 = vsel %vm1303, %v1336, 0.0
    %v1343 = vsel %vm1304, %v1337, 0.0
    %v1344 = vsel %vm1305, %v1338, 0.0
    %v1345 = vsel %vm1306, %v1339, 0.0
    %v1346 = vsel %vm1307, %v1340, 0.0
    %v1347 = vsel %vm1308, %v1341, 0.0
    %v1348 = vsel %vm1315, %v1342, 0.0
    %v1349 = vsel %vm1315, %v1343, 0.0
    %v1350 = vadd.f32 %v1348, %v1349
    %v1351 = vsel %vm1315, %v1344, 0.0
    %v1352 = vadd.f32 %v1350, %v1351
    %v1353 = vsel %vm1315, %v1345, 0.0
    %v1354 = vadd.f32 %v1352, %v1353
    %v1355 = vsel %vm1315, %v1346, 0.0
    %v1356 = vadd.f32 %v1354, %v1355
    %v1357 = vsel %vm166, %v1347, 0.0
    %v1358 = vadd.f32 %v1356, %v1357
    %1359 = vadd.xlane.f32.xlu0 %v1358
    %v1360 = vpop.xlane.xlu0 %1359
    %v1361 = vmul.f32 %v1360, 0.001953125
    %v1362 = vld [vmem:[#allocation12] sm:$0xf]
    %v1363 = vadd.f32 %v1361, 1e-05
    %v1364 = vrsqrt.pop %v1363
    %v1365 = vmul.f32 %v1362, %v1364
    %1367 = vset.pattern.permute.xlu0 0
    %1368 = vperm.xlu0 %1367, %v1365
    %v1369 = vpop.permute.xlu0 %1368
    %v1371 = vmul.f32 %v1330, %v1369
    %v1372 = vmul.f32 %v1331, %v1369
    %v1373 = vmul.f32 %v1332, %v1369
    %v1374 = vmul.f32 %v1333, %v1369
    %v1375 = vmul.f32 %v1334, %v1369
    %v1376 = vmul.f32 %v1335, %v1369
    %v1377 = vld [vmem:[#allocation13] sm:$0xf]
    %1379 = vset.pattern.permute.xlu0 0
    %1380 = vperm.xlu0 %1379, %v1377
    %v1381 = vpop.permute.xlu0 %1380
    %v1383 = vadd.f32 %v1371, %v1381
    %v1384 = vadd.f32 %v1372, %v1381
    %v1385 = vadd.f32 %v1373, %v1381
    %v1386 = vadd.f32 %v1374, %v1381
    %v1387 = vadd.f32 %v1375, %v1381
    %v1388 = vadd.f32 %v1376, %v1381
    %v1389 = vmax.f32 %v1383, 0.0
    %v1390 = vmax.f32 %v1384, 0.0
    %v1391 = vmax.f32 %v1385, 0.0
    %v1392 = vmax.f32 %v1386, 0.0
    %v1393 = vmax.f32 %v1387, 0.0
    %v1394 = vmax.f32 %v1388, 0.0
    %1401 = vrot.lane.b32.xlu0 %v1389, 127
    %v1402 = vpop.permute.xlu0 %1401
    %1403 = vrot.lane.b32.xlu0 %v1390, 127
    %v1404 = vpop.permute.xlu0 %1403
    %1405 = vrot.lane.b32.xlu0 %v1391, 127
    %v1406 = vpop.permute.xlu0 %1405
    %1407 = vrot.lane.b32.xlu0 %v1392, 127
    %v1408 = vpop.permute.xlu0 %1407
    %1409 = vrot.lane.b32.xlu0 %v1393, 127
    %v1410 = vpop.permute.xlu0 %1409
    %1411 = vrot.lane.b32.xlu0 %v1394, 127
    %v1412 = vpop.permute.xlu0 %1411
    %v1413 = vsel %vm189, %v1402, %v1404
    %v1414 = vsel %vm189, %v1404, %v1406
    %v1415 = vsel %vm189, %v1406, %v1408
    %v1416 = vsel %vm189, %v1408, %v1410
    %v1417 = vsel %vm189, %v1410, %v1412
    %1424 = vrot.lane.b32.xlu0 %v1389, 7
    %v1425 = vpop.permute.xlu0 %1424
    %vm1427 = vcmask 56320
    %v1428 = vsel %vm1427, %v1412, %v1425
    %v1429 = vlaneseq
    %v1430 = vshrl.u32 %v1429, 7
    %v1431 = vsub.s32 1, %v1430
    %v1432 = vrot.slane %v1273, %v1431
    %v1433 = vlaneseq
    %v1434 = vshrl.u32 %v1433, 7
    %v1435 = vsub.s32 1, %v1434
    %v1436 = vrot.slane %v1274, %v1435
    %v1437 = vlaneseq
    %v1438 = vshrl.u32 %v1437, 7
    %v1439 = vsub.s32 1, %v1438
    %v1440 = vrot.slane %v1275, %v1439
    %v1441 = vlaneseq
    %v1442 = vshrl.u32 %v1441, 7
    %v1443 = vsub.s32 1, %v1442
    %v1444 = vrot.slane %v1276, %v1443
    %v1445 = vlaneseq
    %v1446 = vshrl.u32 %v1445, 7
    %v1447 = vsub.s32 1, %v1446
    %v1448 = vrot.slane %v1277, %v1447
    %v1449 = vlaneseq
    %v1450 = vshrl.u32 %v1449, 7
    %v1451 = vsub.s32 1, %v1450
    %v1452 = vrot.slane %v1278, %v1451
    %vm1453 = vcmp.eq.s32.totalorder %v1432, 1
    %vm1454 = vcmp.eq.s32.totalorder %v1436, 1
    %vm1455 = vcmp.eq.s32.totalorder %v1440, 1
    %vm1456 = vcmp.eq.s32.totalorder %v1444, 1
    %vm1457 = vcmp.eq.s32.totalorder %v1448, 1
    %vm1458 = vcmp.eq.s32.totalorder %v1452, 1
    %v1459 = vsel %vm1453, %v1413, %v1389
    %v1460 = vsel %vm1454, %v1414, %v1390
    %v1461 = vsel %vm1455, %v1415, %v1391
    %v1462 = vsel %vm1456, %v1416, %v1392
    %v1463 = vsel %vm1457, %v1417, %v1393
    %v1464 = vsel %vm1458, %v1428, %v1394
    %1466 = vrot.lane.b32.xlu0 %v1464, 121
    %v1467 = vpop.permute.xlu0 %1466
    %1474 = vrot.lane.b32.xlu0 %v1459, 1
    %v1475 = vpop.permute.xlu0 %1474
    %1476 = vrot.lane.b32.xlu0 %v1460, 1
    %v1477 = vpop.permute.xlu0 %1476
    %1478 = vrot.lane.b32.xlu0 %v1461, 1
    %v1479 = vpop.permute.xlu0 %1478
    %1480 = vrot.lane.b32.xlu0 %v1462, 1
    %v1481 = vpop.permute.xlu0 %1480
    %1482 = vrot.lane.b32.xlu0 %v1463, 1
    %v1483 = vpop.permute.xlu0 %1482
    %1484 = vrot.lane.b32.xlu0 %v1464, 1
    %v1485 = vpop.permute.xlu0 %1484
    %vm1486 = vcmask 7168
    %v1487 = vsel %vm1486, %v1475, %v1477
    %v1488 = vsel %vm1486, %v1477, %v1479
    %v1489 = vsel %vm1486, %v1479, %v1481
    %v1490 = vsel %vm1486, %v1481, %v1483
    %v1491 = vsel %vm1486, %v1483, %v1485
    %v1498 = vsel %vm1486, %v1467, %v1475
    %v1499 = vlaneseq
    %v1500 = vshrl.u32 %v1499, 7
    %v1501 = vsub.s32 2, %v1500
    %v1502 = vrot.slane %v1273, %v1501
    %v1503 = vlaneseq
    %v1504 = vshrl.u32 %v1503, 7
    %v1505 = vsub.s32 2, %v1504
    %v1506 = vrot.slane %v1274, %v1505
    %v1507 = vlaneseq
    %v1508 = vshrl.u32 %v1507, 7
    %v1509 = vsub.s32 2, %v1508
    %v1510 = vrot.slane %v1275, %v1509
    %v1511 = vlaneseq
    %v1512 = vshrl.u32 %v1511, 7
    %v1513 = vsub.s32 2, %v1512
    %v1514 = vrot.slane %v1276, %v1513
    %v1515 = vlaneseq
    %v1516 = vshrl.u32 %v1515, 7
    %v1517 = vsub.s32 2, %v1516
    %v1518 = vrot.slane %v1277, %v1517
    %v1519 = vlaneseq
    %v1520 = vshrl.u32 %v1519, 7
    %v1521 = vsub.s32 2, %v1520
    %v1522 = vrot.slane %v1278, %v1521
    %vm1523 = vcmp.eq.s32.totalorder %v1502, 1
    %vm1524 = vcmp.eq.s32.totalorder %v1506, 1
    %vm1525 = vcmp.eq.s32.totalorder %v1510, 1
    %vm1526 = vcmp.eq.s32.totalorder %v1514, 1
    %vm1527 = vcmp.eq.s32.totalorder %v1518, 1
    %vm1528 = vcmp.eq.s32.totalorder %v1522, 1
    %v1529 = vsel %vm1523, %v1498, %v1459
    %v1530 = vsel %vm1524, %v1487, %v1460
    %v1531 = vsel %vm1525, %v1488, %v1461
    %v1532 = vsel %vm1526, %v1489, %v1462
    %v1533 = vsel %vm1527, %v1490, %v1463
    %v1534 = vsel %vm1528, %v1491, %v1464
    %1541 = vrot.lane.b32.xlu0 %v1529, 110
    %v1542 = vpop.permute.xlu0 %1541
    %1543 = vrot.lane.b32.xlu0 %v1530, 110
    %v1544 = vpop.permute.xlu0 %1543
    %1545 = vrot.lane.b32.xlu0 %v1531, 110
    %v1546 = vpop.permute.xlu0 %1545
    %1547 = vrot.lane.b32.xlu0 %v1532, 110
    %v1548 = vpop.permute.xlu0 %1547
    %1549 = vrot.lane.b32.xlu0 %v1533, 110
    %v1550 = vpop.permute.xlu0 %1549
    %1551 = vrot.lane.b32.xlu0 %v1534, 110
    %v1552 = vpop.permute.xlu0 %1551
    %v1553 = vsel %vm268, %v1542, %v1544
    %v1554 = vsel %vm268, %v1544, %v1546
    %v1555 = vsel %vm268, %v1546, %v1548
    %v1556 = vsel %vm268, %v1548, %v1550
    %v1557 = vsel %vm268, %v1550, %v1552
    %1563 = vrot.lane.b32.xlu0 %v1529, 118
    %v1564 = vpop.permute.xlu0 %1563
    %vm1566 = vcmask 965632
    %v1567 = vsel %vm1566, %v1557, %v1564
    %v1568 = vlaneseq
    %v1569 = vshrl.u32 %v1568, 7
    %v1570 = vsub.s32 3, %v1569
    %v1571 = vrot.slane %v1273, %v1570
    %v1572 = vlaneseq
    %v1573 = vshrl.u32 %v1572, 7
    %v1574 = vsub.s32 3, %v1573
    %v1575 = vrot.slane %v1274, %v1574
    %v1576 = vlaneseq
    %v1577 = vshrl.u32 %v1576, 7
    %v1578 = vsub.s32 3, %v1577
    %v1579 = vrot.slane %v1275, %v1578
    %v1580 = vlaneseq
    %v1581 = vshrl.u32 %v1580, 7
    %v1582 = vsub.s32 3, %v1581
    %v1583 = vrot.slane %v1276, %v1582
    %v1584 = vlaneseq
    %v1585 = vshrl.u32 %v1584, 7
    %v1586 = vsub.s32 3, %v1585
    %v1587 = vrot.slane %v1277, %v1586
    %v1588 = vlaneseq
    %v1589 = vshrl.u32 %v1588, 7
    %v1590 = vsub.s32 3, %v1589
    %v1591 = vrot.slane %v1278, %v1590
    %vm1592 = vcmp.eq.s32.totalorder %v1571, 1
    %vm1593 = vcmp.eq.s32.totalorder %v1575, 1
    %vm1594 = vcmp.eq.s32.totalorder %v1579, 1
    %vm1595 = vcmp.eq.s32.totalorder %v1583, 1
    %vm1596 = vcmp.eq.s32.totalorder %v1587, 1
    %vm1597 = vcmp.eq.s32.totalorder %v1591, 1
    %v1598 = vsel %vm1592, %v1553, %v1529
    %v1599 = vsel %vm1593, %v1554, %v1530
    %v1600 = vsel %vm1594, %v1555, %v1531
    %v1601 = vsel %vm1595, %v1556, %v1532
    %v1602 = vsel %vm1596, %v1567, %v1533
    %v1603 = vsel %vm1597, %v1564, %v1534
    %1606 = vrot.lane.b32.xlu0 %v1602, 10
    %v1607 = vpop.permute.xlu0 %1606
    %1608 = vrot.lane.b32.xlu0 %v1603, 10
    %v1609 = vpop.permute.xlu0 %1608
    %vm1610 = vcmask 80896
    %v1611 = vsel %vm1610, %v1607, %v1609
    %1617 = vrot.lane.b32.xlu0 %v1598, 18
    %v1618 = vpop.permute.xlu0 %1617
    %1619 = vrot.lane.b32.xlu0 %v1599, 18
    %v1620 = vpop.permute.xlu0 %1619
    %1621 = vrot.lane.b32.xlu0 %v1600, 18
    %v1622 = vpop.permute.xlu0 %1621
    %1623 = vrot.lane.b32.xlu0 %v1601, 18
    %v1624 = vpop.permute.xlu0 %1623
    %1625 = vrot.lane.b32.xlu0 %v1602, 18
    %v1626 = vpop.permute.xlu0 %1625
    %vm1627 = vcmask 146432
    %v1628 = vsel %vm1627, %v1618, %v1620
    %v1629 = vsel %vm1627, %v1620, %v1622
    %v1630 = vsel %vm1627, %v1622, %v1624
    %v1631 = vsel %vm1627, %v1624, %v1626
    %v1638 = vsel %vm1627, %v1611, %v1618
    %v1639 = vlaneseq
    %v1640 = vshrl.u32 %v1639, 7
    %v1641 = vsub.s32 4, %v1640
    %v1642 = vrot.slane %v1273, %v1641
    %v1643 = vlaneseq
    %v1644 = vshrl.u32 %v1643, 7
    %v1645 = vsub.s32 4, %v1644
    %v1646 = vrot.slane %v1274, %v1645
    %v1647 = vlaneseq
    %v1648 = vshrl.u32 %v1647, 7
    %v1649 = vsub.s32 4, %v1648
    %v1650 = vrot.slane %v1275, %v1649
    %v1651 = vlaneseq
    %v1652 = vshrl.u32 %v1651, 7
    %v1653 = vsub.s32 4, %v1652
    %v1654 = vrot.slane %v1276, %v1653
    %v1655 = vlaneseq
    %v1656 = vshrl.u32 %v1655, 7
    %v1657 = vsub.s32 4, %v1656
    %v1658 = vrot.slane %v1277, %v1657
    %v1659 = vlaneseq
    %v1660 = vshrl.u32 %v1659, 7
    %v1661 = vsub.s32 4, %v1660
    %v1662 = vrot.slane %v1278, %v1661
    %vm1663 = vcmp.eq.s32.totalorder %v1642, 1
    %vm1664 = vcmp.eq.s32.totalorder %v1646, 1
    %vm1665 = vcmp.eq.s32.totalorder %v1650, 1
    %vm1666 = vcmp.eq.s32.totalorder %v1654, 1
    %vm1667 = vcmp.eq.s32.totalorder %v1658, 1
    %vm1668 = vcmp.eq.s32.totalorder %v1662, 1
    %v1669 = vsel %vm1663, %v1638, %v1598
    %v1670 = vsel %vm1664, %v1628, %v1599
    %v1671 = vsel %vm1665, %v1629, %v1600
    %v1672 = vsel %vm1666, %v1630, %v1601
    %v1673 = vsel %vm1667, %v1631, %v1602
    %v1674 = vsel %vm1668, %v1626, %v1603
    %1675 = vst [vmem:[#allocation3] sm:$0xff] 0.0
    %1676 = vst [vmem:[#allocation3 + $0x8] sm:$0xff] 0.0
    %1677 = vst [vmem:[#allocation3 + $0x10] sm:$0xff] 0.0
    %v1684 = vcombine.low %v1669, %v1670
    %v1685 = vcombine.low %v1671, %v1672
    %v1686 = vcombine.low %v1673, %v1674
    %1687 = vrot.lane.b32.xlu0 %v1684, 19
    %v1688 = vpop.permute.xlu0 %1687
    %1689 = vrot.lane.b32.xlu0 %v1685, 19
    %v1690 = vpop.permute.xlu0 %1689
    %1691 = vrot.lane.b32.xlu0 %v1686, 19
    %v1692 = vpop.permute.xlu0 %1691
    %v1693 = vrot.slane %v1688, 4
    %v1694 = vrot.slane %v1690, 4
    %v1695 = vrot.slane %v1692, 4
    %vm1696 = vcmask 154624
    %v1697 = vsel %vm1696, %v1693, %v1688
    %v1698 = vsel %vm1315, %v1693, %v1694
    %v1699 = vsel %vm1696, %v1698, %v1690
    %v1700 = vsel %vm1315, %v1694, %v1695
    %v1701 = vsel %vm1696, %v1700, %v1692
    %vm1705 = vcmask 1043608
    %vm1706 = vcmask 1047556
    %vm1707 = vmor %vm1706, %vm1705
    %1708 = vst.msk [vmem:[#allocation3] sm:$0xff] %vm1707, %v1697
    %1709 = vst [vmem:[#allocation3 + $0x8] sm:$0xff] %v1699
    %vm1710 = vcmask 220164
    %vm1711 = vmor %vm1710, %vm1315
    %1712 = vst.msk [vmem:[#allocation3 + $0x10] sm:$0xff] %vm1711, %v1701
    %v1713 = vld [vmem:[#allocation3] sm:$0xff]
    %v1714 = vld [vmem:[#allocation3 + $0x8] sm:$0xff]
    %v1715 = vld [vmem:[#allocation3 + $0x10] sm:$0xff]
    %v1719 = vcombine.high %v1713, %v1713
    %v1720 = vcombine.high %v1714, %v1714
    %v1721 = vcombine.high %v1715, %v1715
    %1725 = vst [vmem:[#allocation2] sm:$0xf] %v1713
    %1726 = vst [vmem:[#allocation2 + $0x8] sm:$0xf] %v1719
    %1727 = vst [vmem:[#allocation2 + $0x10] sm:$0xf] %v1714
    %1728 = vst [vmem:[#allocation2 + $0x18] sm:$0xf] %v1720
    %1729 = vst [vmem:[#allocation2 + $0x20] sm:$0xf] %v1715
    %1730 = vst.msk [vmem:[#allocation2 + $0x28] sm:$0xf] %vm166, %v1721
    %v1731 = vld [vmem:[#allocation3] sm:$0xff]
    %v1732 = vld [vmem:[#allocation3 + $0x8] sm:$0xff]
    %v1733 = vld [vmem:[#allocation3 + $0x10] sm:$0xff]
    %v1737 = vcombine.low %v1731, %v1731
    %v1738 = vcombine.low %v1732, %v1732
    %v1739 = vcombine.low %v1733, %v1733
    %1740 = vrot.lane.b32.xlu0 %v1737, 127
    %v1741 = vpop.permute.xlu0 %1740
    %1742 = vrot.lane.b32.xlu0 %v1731, 127
    %v1743 = vpop.permute.xlu0 %1742
    %1744 = vrot.lane.b32.xlu0 %v1738, 127
    %v1745 = vpop.permute.xlu0 %1744
    %1746 = vrot.lane.b32.xlu0 %v1732, 127
    %v1747 = vpop.permute.xlu0 %1746
    %1748 = vrot.lane.b32.xlu0 %v1739, 127
    %v1749 = vpop.permute.xlu0 %1748
    %1750 = vrot.lane.b32.xlu0 %v1733, 127
    %v1751 = vpop.permute.xlu0 %1750
    %v1752 = vsel %vm189, %v1741, %v1743
    %v1753 = vsel %vm189, %v1743, %v1745
    %v1754 = vsel %vm189, %v1745, %v1747
    %v1755 = vsel %vm189, %v1747, %v1749
    %v1756 = vsel %vm189, %v1749, %v1751
    %1763 = vst [vmem:[#allocation2] sm:$0xf0] %v1752
    %1764 = vst [vmem:[#allocation2 + $0x8] sm:$0xf0] %v1753
    %1765 = vst [vmem:[#allocation2 + $0x10] sm:$0xf0] %v1754
    %1766 = vst [vmem:[#allocation2 + $0x18] sm:$0xf0] %v1755
    %1767 = vst [vmem:[#allocation2 + $0x20] sm:$0xf0] %v1756
    %1768 = vst.msk [vmem:[#allocation2 + $0x28] sm:$0xf0] %vm206, %v1751
    %v1769 = vld [vmem:[#allocation3] sm:$0xff]
    %v1770 = vld [vmem:[#allocation3 + $0x8] sm:$0xff]
    %v1771 = vld [vmem:[#allocation3 + $0x10] sm:$0xff]
    %v1775 = vcombine.high %v1769, %v1769
    %v1776 = vcombine.high %v1770, %v1770
    %v1777 = vcombine.high %v1771, %v1771
    %1778 = vrot.lane.b32.xlu0 %v1769, 126
    %v1779 = vpop.permute.xlu0 %1778
    %1780 = vrot.lane.b32.xlu0 %v1775, 126
    %v1781 = vpop.permute.xlu0 %1780
    %1782 = vrot.lane.b32.xlu0 %v1770, 126
    %v1783 = vpop.permute.xlu0 %1782
    %1784 = vrot.lane.b32.xlu0 %v1776, 126
    %v1785 = vpop.permute.xlu0 %1784
    %1786 = vrot.lane.b32.xlu0 %v1771, 126
    %v1787 = vpop.permute.xlu0 %1786
    %1788 = vrot.lane.b32.xlu0 %v1777, 126
    %v1789 = vpop.permute.xlu0 %1788
    %v1790 = vsel %vm229, %v1779, %v1781
    %v1791 = vsel %vm229, %v1781, %v1783
    %v1792 = vsel %vm229, %v1783, %v1785
    %v1793 = vsel %vm229, %v1785, %v1787
    %v1794 = vsel %vm229, %v1787, %v1789
    %1801 = vst [vmem:[#allocation2 + $0x30] sm:$0xf] %v1790
    %1802 = vst [vmem:[#allocation2 + $0x38] sm:$0xf] %v1791
    %1803 = vst [vmem:[#allocation2 + $0x40] sm:$0xf] %v1792
    %1804 = vst [vmem:[#allocation2 + $0x48] sm:$0xf] %v1793
    %1805 = vst [vmem:[#allocation2 + $0x50] sm:$0xf] %v1794
    %1806 = vst.msk [vmem:[#allocation2 + $0x58] sm:$0xf] %vm166, %v1789
    %v1807 = vld [vmem:[#allocation3] sm:$0xff]
    %v1808 = vld [vmem:[#allocation3 + $0x8] sm:$0xff]
    %v1809 = vld [vmem:[#allocation3 + $0x10] sm:$0xff]
    %v1813 = vcombine.low %v1807, %v1807
    %v1814 = vcombine.low %v1808, %v1808
    %v1815 = vcombine.low %v1809, %v1809
    %1816 = vrot.lane.b32.xlu0 %v1813, 110
    %v1817 = vpop.permute.xlu0 %1816
    %1818 = vrot.lane.b32.xlu0 %v1807, 110
    %v1819 = vpop.permute.xlu0 %1818
    %1820 = vrot.lane.b32.xlu0 %v1814, 110
    %v1821 = vpop.permute.xlu0 %1820
    %1822 = vrot.lane.b32.xlu0 %v1808, 110
    %v1823 = vpop.permute.xlu0 %1822
    %1824 = vrot.lane.b32.xlu0 %v1815, 110
    %v1825 = vpop.permute.xlu0 %1824
    %1826 = vrot.lane.b32.xlu0 %v1809, 110
    %v1827 = vpop.permute.xlu0 %1826
    %v1828 = vsel %vm268, %v1817, %v1819
    %v1829 = vsel %vm268, %v1819, %v1821
    %v1830 = vsel %vm268, %v1821, %v1823
    %v1831 = vsel %vm268, %v1823, %v1825
    %v1832 = vsel %vm268, %v1825, %v1827
    %1839 = vst [vmem:[#allocation2 + $0x30] sm:$0xf0] %v1828
    %1840 = vst [vmem:[#allocation2 + $0x38] sm:$0xf0] %v1829
    %1841 = vst [vmem:[#allocation2 + $0x40] sm:$0xf0] %v1830
    %1842 = vst [vmem:[#allocation2 + $0x48] sm:$0xf0] %v1831
    %1843 = vst [vmem:[#allocation2 + $0x50] sm:$0xf0] %v1832
    %1844 = vst.msk [vmem:[#allocation2 + $0x58] sm:$0xf0] %vm206, %v1827
    %v1845 = vld [vmem:[#allocation3] sm:$0xff]
    %v1846 = vld [vmem:[#allocation3 + $0x8] sm:$0xff]
    %v1847 = vld [vmem:[#allocation3 + $0x10] sm:$0xff]
    %v1851 = vcombine.high %v1845, %v1845
    %v1852 = vcombine.high %v1846, %v1846
    %v1853 = vcombine.high %v1847, %v1847
    %1854 = vrot.lane.b32.xlu0 %v1845, 109
    %v1855 = vpop.permute.xlu0 %1854
    %1856 = vrot.lane.b32.xlu0 %v1851, 109
    %v1857 = vpop.permute.xlu0 %1856
    %1858 = vrot.lane.b32.xlu0 %v1846, 109
    %v1859 = vpop.permute.xlu0 %1858
    %1860 = vrot.lane.b32.xlu0 %v1852, 109
    %v1861 = vpop.permute.xlu0 %1860
    %1862 = vrot.lane.b32.xlu0 %v1847, 109
    %v1863 = vpop.permute.xlu0 %1862
    %1864 = vrot.lane.b32.xlu0 %v1853, 109
    %v1865 = vpop.permute.xlu0 %1864
    %v1866 = vsel %vm307, %v1855, %v1857
    %v1867 = vsel %vm307, %v1857, %v1859
    %v1868 = vsel %vm307, %v1859, %v1861
    %v1869 = vsel %vm307, %v1861, %v1863
    %v1870 = vsel %vm307, %v1863, %v1865
    %1877 = vst [vmem:[#allocation2 + $0x60] sm:$0xf] %v1866
    %1878 = vst [vmem:[#allocation2 + $0x68] sm:$0xf] %v1867
    %1879 = vst [vmem:[#allocation2 + $0x70] sm:$0xf] %v1868
    %1880 = vst [vmem:[#allocation2 + $0x78] sm:$0xf] %v1869
    %1881 = vst [vmem:[#allocation2 + $0x80] sm:$0xf] %v1870
    %1882 = vst.msk [vmem:[#allocation2 + $0x88] sm:$0xf] %vm166, %v1865
    %v1883 = vld [vmem:[#allocation3] sm:$0xff]
    %v1884 = vld [vmem:[#allocation3 + $0x8] sm:$0xff]
    %v1885 = vld [vmem:[#allocation3 + $0x10] sm:$0xff]
    %v1889 = vcombine.low %v1883, %v1883
    %v1890 = vcombine.low %v1884, %v1884
    %v1891 = vcombine.low %v1885, %v1885
    %1892 = vrot.lane.b32.xlu0 %v1889, 108
    %v1893 = vpop.permute.xlu0 %1892
    %1894 = vrot.lane.b32.xlu0 %v1883, 108
    %v1895 = vpop.permute.xlu0 %1894
    %1896 = vrot.lane.b32.xlu0 %v1890, 108
    %v1897 = vpop.permute.xlu0 %1896
    %1898 = vrot.lane.b32.xlu0 %v1884, 108
    %v1899 = vpop.permute.xlu0 %1898
    %1900 = vrot.lane.b32.xlu0 %v1891, 108
    %v1901 = vpop.permute.xlu0 %1900
    %1902 = vrot.lane.b32.xlu0 %v1885, 108
    %v1903 = vpop.permute.xlu0 %1902
    %v1904 = vsel %vm346, %v1893, %v1895
    %v1905 = vsel %vm346, %v1895, %v1897
    %v1906 = vsel %vm346, %v1897, %v1899
    %v1907 = vsel %vm346, %v1899, %v1901
    %v1908 = vsel %vm346, %v1901, %v1903
    %1915 = vst [vmem:[#allocation2 + $0x60] sm:$0xf0] %v1904
    %1916 = vst [vmem:[#allocation2 + $0x68] sm:$0xf0] %v1905
    %1917 = vst [vmem:[#allocation2 + $0x70] sm:$0xf0] %v1906
    %1918 = vst [vmem:[#allocation2 + $0x78] sm:$0xf0] %v1907
    %1919 = vst [vmem:[#allocation2 + $0x80] sm:$0xf0] %v1908
    %1920 = vst.msk [vmem:[#allocation2 + $0x88] sm:$0xf0] %vm206, %v1903
    %v1921 = vld [vmem:[#allocation3] sm:$0xff]
    %v1922 = vld [vmem:[#allocation3 + $0x8] sm:$0xff]
    %v1923 = vld [vmem:[#allocation3 + $0x10] sm:$0xff]
    %v1927 = vcombine.high %v1921, %v1921
    %v1928 = vcombine.high %v1922, %v1922
    %v1929 = vcombine.high %v1923, %v1923
    %1930 = vrot.lane.b32.xlu0 %v1921, 92
    %v1931 = vpop.permute.xlu0 %1930
    %1932 = vrot.lane.b32.xlu0 %v1927, 92
    %v1933 = vpop.permute.xlu0 %1932
    %1934 = vrot.lane.b32.xlu0 %v1922, 92
    %v1935 = vpop.permute.xlu0 %1934
    %1936 = vrot.lane.b32.xlu0 %v1928, 92
    %v1937 = vpop.permute.xlu0 %1936
    %1938 = vrot.lane.b32.xlu0 %v1923, 92
    %v1939 = vpop.permute.xlu0 %1938
    %1940 = vrot.lane.b32.xlu0 %v1929, 92
    %v1941 = vpop.permute.xlu0 %1940
    %v1942 = vsel %vm385, %v1931, %v1933
    %v1943 = vsel %vm385, %v1933, %v1935
    %v1944 = vsel %vm385, %v1935, %v1937
    %v1945 = vsel %vm385, %v1937, %v1939
    %v1946 = vsel %vm385, %v1939, %v1941
    %1953 = vst [vmem:[#allocation2 + $0x90] sm:$0xf] %v1942
    %1954 = vst [vmem:[#allocation2 + $0x98] sm:$0xf] %v1943
    %1955 = vst [vmem:[#allocation2 + $0xa0] sm:$0xf] %v1944
    %1956 = vst [vmem:[#allocation2 + $0xa8] sm:$0xf] %v1945
    %1957 = vst [vmem:[#allocation2 + $0xb0] sm:$0xf] %v1946
    %1958 = vst.msk [vmem:[#allocation2 + $0xb8] sm:$0xf] %vm166, %v1941
    %v1959 = vld [vmem:[#allocation3] sm:$0xff]
    %v1960 = vld [vmem:[#allocation3 + $0x8] sm:$0xff]
    %v1961 = vld [vmem:[#allocation3 + $0x10] sm:$0xff]
    %v1965 = vcombine.low %v1959, %v1959
    %v1966 = vcombine.low %v1960, %v1960
    %v1967 = vcombine.low %v1961, %v1961
    %1968 = vrot.lane.b32.xlu0 %v1965, 91
    %v1969 = vpop.permute.xlu0 %1968
    %1970 = vrot.lane.b32.xlu0 %v1959, 91
    %v1971 = vpop.permute.xlu0 %1970
    %1972 = vrot.lane.b32.xlu0 %v1966, 91
    %v1973 = vpop.permute.xlu0 %1972
    %1974 = vrot.lane.b32.xlu0 %v1960, 91
    %v1975 = vpop.permute.xlu0 %1974
    %1976 = vrot.lane.b32.xlu0 %v1967, 91
    %v1977 = vpop.permute.xlu0 %1976
    %1978 = vrot.lane.b32.xlu0 %v1961, 91
    %v1979 = vpop.permute.xlu0 %1978
    %v1980 = vsel %vm424, %v1969, %v1971
    %v1981 = vsel %vm424, %v1971, %v1973
    %v1982 = vsel %vm424, %v1973, %v1975
    %v1983 = vsel %vm424, %v1975, %v1977
    %v1984 = vsel %vm424, %v1977, %v1979
    %1991 = vst [vmem:[#allocation2 + $0x90] sm:$0xf0] %v1980
    %1992 = vst [vmem:[#allocation2 + $0x98] sm:$0xf0] %v1981
    %1993 = vst [vmem:[#allocation2 + $0xa0] sm:$0xf0] %v1982
    %1994 = vst [vmem:[#allocation2 + $0xa8] sm:$0xf0] %v1983
    %1995 = vst [vmem:[#allocation2 + $0xb0] sm:$0xf0] %v1984
    %1996 = vst.msk [vmem:[#allocation2 + $0xb8] sm:$0xf0] %vm206, %v1979
    %v1997 = vld [vmem:[#allocation3] sm:$0xff]
    %v1998 = vld [vmem:[#allocation3 + $0x8] sm:$0xff]
    %v1999 = vld [vmem:[#allocation3 + $0x10] sm:$0xff]
    %v2003 = vcombine.high %v1997, %v1997
    %v2004 = vcombine.high %v1998, %v1998
    %v2005 = vcombine.high %v1999, %v1999
    %2006 = vrot.lane.b32.xlu0 %v1997, 90
    %v2007 = vpop.permute.xlu0 %2006
    %2008 = vrot.lane.b32.xlu0 %v2003, 90
    %v2009 = vpop.permute.xlu0 %2008
    %2010 = vrot.lane.b32.xlu0 %v1998, 90
    %v2011 = vpop.permute.xlu0 %2010
    %2012 = vrot.lane.b32.xlu0 %v2004, 90
    %v2013 = vpop.permute.xlu0 %2012
    %2014 = vrot.lane.b32.xlu0 %v1999, 90
    %v2015 = vpop.permute.xlu0 %2014
    %2016 = vrot.lane.b32.xlu0 %v2005, 90
    %v2017 = vpop.permute.xlu0 %2016
    %v2018 = vsel %vm463, %v2007, %v2009
    %v2019 = vsel %vm463, %v2009, %v2011
    %v2020 = vsel %vm463, %v2011, %v2013
    %v2021 = vsel %vm463, %v2013, %v2015
    %v2022 = vsel %vm463, %v2015, %v2017
    %2029 = vst [vmem:[#allocation2 + $0xc0] sm:$0xf] %v2018
    %2030 = vst [vmem:[#allocation2 + $0xc8] sm:$0xf] %v2019
    %2031 = vst [vmem:[#allocation2 + $0xd0] sm:$0xf] %v2020
    %2032 = vst [vmem:[#allocation2 + $0xd8] sm:$0xf] %v2021
    %2033 = vst [vmem:[#allocation2 + $0xe0] sm:$0xf] %v2022
    %2034 = vst.msk [vmem:[#allocation2 + $0xe8] sm:$0xf] %vm166, %v2017
    %v2035 = vld [vmem:[#allocation15] sm:$0xf]
    %v2036 = vld [vmem:[#allocation2] sm:$0xff]
    %v2037 = vld [vmem:[#allocation2 + $0x8] sm:$0xff]
    %v2038 = vld [vmem:[#allocation2 + $0x10] sm:$0xff]
    %v2039 = vld [vmem:[#allocation2 + $0x18] sm:$0xff]
    %v2040 = vld [vmem:[#allocation2 + $0x20] sm:$0xff]
    %v2041 = vld [vmem:[#allocation2 + $0x28] sm:$0xff]
    %v2042 = vld [vmem:[#allocation2 + $0x30] sm:$0xff]
    %v2043 = vld [vmem:[#allocation2 + $0x38] sm:$0xff]
    %v2044 = vld [vmem:[#allocation2 + $0x40] sm:$0xff]
    %v2045 = vld [vmem:[#allocation2 + $0x48] sm:$0xff]
    %v2046 = vld [vmem:[#allocation2 + $0x50] sm:$0xff]
    %v2047 = vld [vmem:[#allocation2 + $0x58] sm:$0xff]
    %v2048 = vld [vmem:[#allocation2 + $0x60] sm:$0xff]
    %v2049 = vld [vmem:[#allocation2 + $0x68] sm:$0xff]
    %v2050 = vld [vmem:[#allocation2 + $0x70] sm:$0xff]
    %v2051 = vld [vmem:[#allocation2 + $0x78] sm:$0xff]
    %v2052 = vld [vmem:[#allocation2 + $0x80] sm:$0xff]
    %v2053 = vld [vmem:[#allocation2 + $0x88] sm:$0xff]
    %v2054 = vld [vmem:[#allocation2 + $0x90] sm:$0xff]
    %v2055 = vld [vmem:[#allocation2 + $0x98] sm:$0xff]
    %v2056 = vld [vmem:[#allocation2 + $0xa0] sm:$0xff]
    %v2057 = vld [vmem:[#allocation2 + $0xa8] sm:$0xff]
    %v2058 = vld [vmem:[#allocation2 + $0xb0] sm:$0xff]
    %v2059 = vld [vmem:[#allocation2 + $0xb8] sm:$0xff]
    %v2060 = vld [vmem:[#allocation2 + $0xc0] sm:$0xf]
    %v2061 = vld [vmem:[#allocation2 + $0xc8] sm:$0xf]
    %v2062 = vld [vmem:[#allocation2 + $0xd0] sm:$0xf]
    %v2063 = vld [vmem:[#allocation2 + $0xd8] sm:$0xf]
    %v2064 = vld [vmem:[#allocation2 + $0xe0] sm:$0xf]
    %v2065 = vld [vmem:[#allocation2 + $0xe8] sm:$0xf]
    %vm2066 = vcmask 293888
    %v2068 = vsel %vm2066, %v2035, 0
    %v2071 = vsel %vm1315, %v2060, 0
    %v2074 = vsel %vm1315, %v2061, 0
    %v2077 = vsel %vm1315, %v2062, 0
    %v2080 = vsel %vm1315, %v2063, 0
    %v2083 = vsel %vm1315, %v2064, 0
    %v2086 = vsel %vm1315, %v2065, 0
    %2088 = vmatprep.subr.mxu0 %v2037
    %2089 = vmatpush1.msra.mxu0 %v2036
    %2090 = vmatprep.subr.mxu0 %v2043
    %2091 = vmatpush1.msra.mxu0 %v2042
    %2092 = vmatprep.subr.mxu0 %v2049
    %2093 = vmatpush1.msra.mxu0 %v2048
    %2094 = vmatprep.subr.mxu0 %v2055
    %2095 = vmatpush1.msra.mxu0 %v2054
    %2096 = vmatprep.subr.mxu0 %v2074
    %2097 = vmatpush1.msra.mxu0 %v2071
    %2098 = vmatprep.subr.mxu0 0.0
    %2099 = vmatpush1.msra.mxu0 0.0
    %2100 = vmatprep.subr.mxu0 0.0
    %2101 = vmatpush1.msra.mxu0 0.0
    %2102 = vmatprep.subr.mxu0 0.0
    %2103 = vmatpush1.msra.mxu0 0.0
    %2104 = vmatprep.subr.mxu0 0.0
    %2105 = vmatpush1.msra.mxu0 0.0
    %2106 = vmatprep.subr.mxu0 0.0
    %2107 = vmatpush1.msra.mxu0 0.0
    %2108 = vmatprep.subr.mxu0 0.0
    %2109 = vmatpush1.msra.mxu0 0.0
    %2110 = vmatprep.subr.mxu0 0.0
    %2111 = vmatpush1.msra.mxu0 0.0
    %2112 = vmatprep.subr.mxu0 0.0
    %2113 = vmatpush1.msra.mxu0 0.0
    %2114 = vmatprep.subr.mxu0 0.0
    %2115 = vmatpush1.msra.mxu0 0.0
    %2116 = vmatprep.subr.mxu0 0.0
    %2117 = vmatpush1.msra.mxu0 0.0
    %2118 = vmatprep.subr.mxu0 0.0
    %2119 = vmatpush1.msra.mxu0 0.0
    %2120 = vmatprep.subr.mxu0 0.0
    %2121 = vmatpush1.msra.mxu0 0.0
    %2122 = vmatprep.subr.mxu0 0.0
    %2123 = vmatpush1.msra.mxu0 0.0
    %2124 = vmatprep.subr.mxu0 0.0
    %2125 = vmatpush1.msra.mxu0 0.0
    %2126 = vmatprep.subr.mxu0 0.0
    %2127 = vmatpush1.msra.mxu0 0.0
    %2128 = vmatprep.subr.mxu0 0.0
    %2129 = vmatpush1.msra.mxu0 0.0
    %2130 = vmatprep.subr.mxu0 0.0
    %2131 = vmatpush1.msra.mxu0 0.0
    %2132 = vmatprep.subr.mxu0 0.0
    %2133 = vmatpush1.msra.mxu0 0.0
    %2134 = vmatprep.subr.mxu0 0.0
    %2135 = vmatpush1.msra.mxu0 0.0
    %2136 = vmatprep.subr.mxu0 0.0
    %2137 = vmatpush1.msra.mxu0 0.0
    %2138 = vmatprep.subr.mxu0 0.0
    %2139 = vmatpush1.msra.mxu0 0.0
    %2140 = vmatprep.subr.mxu0 0.0
    %2141 = vmatpush1.msra.mxu0 0.0
    %2142 = vmatprep.subr.mxu0 0.0
    %2143 = vmatpush1.msra.mxu0 0.0
    %2144 = vmatprep.subr.mxu0 0.0
    %2145 = vmatpush1.msra.mxu0 0.0
    %2146 = vmatprep.subr.mxu0 0.0
    %2147 = vmatpush1.msra.mxu0 0.0
    %2148 = vmatprep.subr.mxu0 0.0
    %2149 = vmatpush1.msra.mxu0 0.0
    %2150 = vmatprep.subr.mxu0 0.0
    %2151 = vmatpush1.msra.mxu0 0.0
    %2152 = vmatprep.mubr.f32.mxu0 0.0
    %2153 = vmatmul.mubr.f32.gmra.mrb[0].mxu0 %v2068
    %v2154 = vpop.f32.mrb[0].mxu0
    %v2155 = vadd.f32 0.0, %v2154
    %v2156 = vpop.f32.mrb[0].mxu0
    %v2157 = vadd.f32 0.0, %v2156
    %2158 = vdwg.mxu0
    %2159 = vmatprep.subr.mxu0 %v2039
    %2160 = vmatpush1.msra.mxu0 %v2038
    %2161 = vmatprep.subr.mxu0 %v2045
    %2162 = vmatpush1.msra.mxu0 %v2044
    %2163 = vmatprep.subr.mxu0 %v2051
    %2164 = vmatpush1.msra.mxu0 %v2050
    %2165 = vmatprep.subr.mxu0 %v2057
    %2166 = vmatpush1.msra.mxu0 %v2056
    %2167 = vmatprep.subr.mxu0 %v2080
    %2168 = vmatpush1.msra.mxu0 %v2077
    %2169 = vmatprep.subr.mxu0 0.0
    %2170 = vmatpush1.msra.mxu0 0.0
    %2171 = vmatprep.subr.mxu0 0.0
    %2172 = vmatpush1.msra.mxu0 0.0
    %2173 = vmatprep.subr.mxu0 0.0
    %2174 = vmatpush1.msra.mxu0 0.0
    %2175 = vmatprep.subr.mxu0 0.0
    %2176 = vmatpush1.msra.mxu0 0.0
    %2177 = vmatprep.subr.mxu0 0.0
    %2178 = vmatpush1.msra.mxu0 0.0
    %2179 = vmatprep.subr.mxu0 0.0
    %2180 = vmatpush1.msra.mxu0 0.0
    %2181 = vmatprep.subr.mxu0 0.0
    %2182 = vmatpush1.msra.mxu0 0.0
    %2183 = vmatprep.subr.mxu0 0.0
    %2184 = vmatpush1.msra.mxu0 0.0
    %2185 = vmatprep.subr.mxu0 0.0
    %2186 = vmatpush1.msra.mxu0 0.0
    %2187 = vmatprep.subr.mxu0 0.0
    %2188 = vmatpush1.msra.mxu0 0.0
    %2189 = vmatprep.subr.mxu0 0.0
    %2190 = vmatpush1.msra.mxu0 0.0
    %2191 = vmatprep.subr.mxu0 0.0
    %2192 = vmatpush1.msra.mxu0 0.0
    %2193 = vmatprep.subr.mxu0 0.0
    %2194 = vmatpush1.msra.mxu0 0.0
    %2195 = vmatprep.subr.mxu0 0.0
    %2196 = vmatpush1.msra.mxu0 0.0
    %2197 = vmatprep.subr.mxu0 0.0
    %2198 = vmatpush1.msra.mxu0 0.0
    %2199 = vmatprep.subr.mxu0 0.0
    %2200 = vmatpush1.msra.mxu0 0.0
    %2201 = vmatprep.subr.mxu0 0.0
    %2202 = vmatpush1.msra.mxu0 0.0
    %2203 = vmatprep.subr.mxu0 0.0
    %2204 = vmatpush1.msra.mxu0 0.0
    %2205 = vmatprep.subr.mxu0 0.0
    %2206 = vmatpush1.msra.mxu0 0.0
    %2207 = vmatprep.subr.mxu0 0.0
    %2208 = vmatpush1.msra.mxu0 0.0
    %2209 = vmatprep.subr.mxu0 0.0
    %2210 = vmatpush1.msra.mxu0 0.0
    %2211 = vmatprep.subr.mxu0 0.0
    %2212 = vmatpush1.msra.mxu0 0.0
    %2213 = vmatprep.subr.mxu0 0.0
    %2214 = vmatpush1.msra.mxu0 0.0
    %2215 = vmatprep.subr.mxu0 0.0
    %2216 = vmatpush1.msra.mxu0 0.0
    %2217 = vmatprep.subr.mxu0 0.0
    %2218 = vmatpush1.msra.mxu0 0.0
    %2219 = vmatprep.subr.mxu0 0.0
    %2220 = vmatpush1.msra.mxu0 0.0
    %2221 = vmatprep.subr.mxu0 0.0
    %2222 = vmatpush1.msra.mxu0 0.0
    %2223 = vmatprep.mubr.f32.mxu0 0.0
    %2224 = vmatmul.mubr.f32.gmra.mrb[0].mxu0 %v2068
    %v2225 = vpop.f32.mrb[0].mxu0
    %v2226 = vadd.f32 0.0, %v2225
    %v2227 = vpop.f32.mrb[0].mxu0
    %v2228 = vadd.f32 0.0, %v2227
    %2229 = vdwg.mxu0
    %2230 = vmatprep.subr.mxu0 %v2041
    %2231 = vmatpush1.msra.mxu0 %v2040
    %2232 = vmatprep.subr.mxu0 %v2047
    %2233 = vmatpush1.msra.mxu0 %v2046
    %2234 = vmatprep.subr.mxu0 %v2053
    %2235 = vmatpush1.msra.mxu0 %v2052
    %2236 = vmatprep.subr.mxu0 %v2059
    %2237 = vmatpush1.msra.mxu0 %v2058
    %2238 = vmatprep.subr.mxu0 %v2086
    %2239 = vmatpush1.msra.mxu0 %v2083
    %2240 = vmatprep.subr.mxu0 0.0
    %2241 = vmatpush1.msra.mxu0 0.0
    %2242 = vmatprep.subr.mxu0 0.0
    %2243 = vmatpush1.msra.mxu0 0.0
    %2244 = vmatprep.subr.mxu0 0.0
    %2245 = vmatpush1.msra.mxu0 0.0
    %2246 = vmatprep.subr.mxu0 0.0
    %2247 = vmatpush1.msra.mxu0 0.0
    %2248 = vmatprep.subr.mxu0 0.0
    %2249 = vmatpush1.msra.mxu0 0.0
    %2250 = vmatprep.subr.mxu0 0.0
    %2251 = vmatpush1.msra.mxu0 0.0
    %2252 = vmatprep.subr.mxu0 0.0
    %2253 = vmatpush1.msra.mxu0 0.0
    %2254 = vmatprep.subr.mxu0 0.0
    %2255 = vmatpush1.msra.mxu0 0.0
    %2256 = vmatprep.subr.mxu0 0.0
    %2257 = vmatpush1.msra.mxu0 0.0
    %2258 = vmatprep.subr.mxu0 0.0
    %2259 = vmatpush1.msra.mxu0 0.0
    %2260 = vmatprep.subr.mxu0 0.0
    %2261 = vmatpush1.msra.mxu0 0.0
    %2262 = vmatprep.subr.mxu0 0.0
    %2263 = vmatpush1.msra.mxu0 0.0
    %2264 = vmatprep.subr.mxu0 0.0
    %2265 = vmatpush1.msra.mxu0 0.0
    %2266 = vmatprep.subr.mxu0 0.0
    %2267 = vmatpush1.msra.mxu0 0.0
    %2268 = vmatprep.subr.mxu0 0.0
    %2269 = vmatpush1.msra.mxu0 0.0
    %2270 = vmatprep.subr.mxu0 0.0
    %2271 = vmatpush1.msra.mxu0 0.0
    %2272 = vmatprep.subr.mxu0 0.0
    %2273 = vmatpush1.msra.mxu0 0.0
    %2274 = vmatprep.subr.mxu0 0.0
    %2275 = vmatpush1.msra.mxu0 0.0
    %2276 = vmatprep.subr.mxu0 0.0
    %2277 = vmatpush1.msra.mxu0 0.0
    %2278 = vmatprep.subr.mxu0 0.0
    %2279 = vmatpush1.msra.mxu0 0.0
    %2280 = vmatprep.subr.mxu0 0.0
    %2281 = vmatpush1.msra.mxu0 0.0
    %2282 = vmatprep.subr.mxu0 0.0
    %2283 = vmatpush1.msra.mxu0 0.0
    %2284 = vmatprep.subr.mxu0 0.0
    %2285 = vmatpush1.msra.mxu0 0.0
    %2286 = vmatprep.subr.mxu0 0.0
    %2287 = vmatpush1.msra.mxu0 0.0
    %2288 = vmatprep.subr.mxu0 0.0
    %2289 = vmatpush1.msra.mxu0 0.0
    %2290 = vmatprep.subr.mxu0 0.0
    %2291 = vmatpush1.msra.mxu0 0.0
    %2292 = vmatprep.subr.mxu0 0.0
    %2293 = vmatpush1.msra.mxu0 0.0
    %2294 = vmatprep.mubr.f32.mxu0 0.0
    %2295 = vmatmul.mubr.f32.gmra.mrb[0].mxu0 %v2068
    %v2296 = vpop.f32.mrb[0].mxu0
    %v2297 = vadd.f32 0.0, %v2296
    %v2298 = vpop.f32.mrb[0].mxu0
    %v2299 = vadd.f32 0.0, %v2298
    %2300 = vdwg.mxu0
    %v2301 = vsel %vm1303, %v2155, 0.0
    %v2302 = vsel %vm1304, %v2157, 0.0
    %v2303 = vsel %vm1305, %v2226, 0.0
    %v2304 = vsel %vm1306, %v2228, 0.0
    %v2305 = vsel %vm1307, %v2297, 0.0
    %v2306 = vsel %vm1308, %v2299, 0.0
    %v2307 = vsel %vm1315, %v2301, 0.0
    %v2308 = vsel %vm1315, %v2302, 0.0
    %v2309 = vadd.f32 %v2307, %v2308
    %v2310 = vsel %vm1315, %v2303, 0.0
    %v2311 = vadd.f32 %v2309, %v2310
    %v2312 = vsel %vm1315, %v2304, 0.0
    %v2313 = vadd.f32 %v2311, %v2312
    %v2314 = vsel %vm1315, %v2305, 0.0
    %v2315 = vadd.f32 %v2313, %v2314
    %v2316 = vsel %vm166, %v2306, 0.0
    %v2317 = vadd.f32 %v2315, %v2316
    %2318 = vadd.xlane.f32.xlu0 %v2317
    %v2319 = vpop.xlane.xlu0 %2318
    %v2320 = vmul.f32 %v2319, 0.001953125
    %v2321 = vsub.f32 %v2155, %v2320
    %v2322 = vsub.f32 %v2157, %v2320
    %v2323 = vsub.f32 %v2226, %v2320
    %v2324 = vsub.f32 %v2228, %v2320
    %v2325 = vsub.f32 %v2297, %v2320
    %v2326 = vsub.f32 %v2299, %v2320
    %v2327 = vmul.f32 %v2321, %v2321
    %v2328 = vmul.f32 %v2322, %v2322
    %v2329 = vmul.f32 %v2323, %v2323
    %v2330 = vmul.f32 %v2324, %v2324
    %v2331 = vmul.f32 %v2325, %v2325
    %v2332 = vmul.f32 %v2326, %v2326
    %v2333 = vsel %vm1303, %v2327, 0.0
    %v2334 = vsel %vm1304, %v2328, 0.0
    %v2335 = vsel %vm1305, %v2329, 0.0
    %v2336 = vsel %vm1306, %v2330, 0.0
    %v2337 = vsel %vm1307, %v2331, 0.0
    %v2338 = vsel %vm1308, %v2332, 0.0
    %v2339 = vsel %vm1315, %v2333, 0.0
    %v2340 = vsel %vm1315, %v2334, 0.0
    %v2341 = vadd.f32 %v2339, %v2340
    %v2342 = vsel %vm1315, %v2335, 0.0
    %v2343 = vadd.f32 %v2341, %v2342
    %v2344 = vsel %vm1315, %v2336, 0.0
    %v2345 = vadd.f32 %v2343, %v2344
    %v2346 = vsel %vm1315, %v2337, 0.0
    %v2347 = vadd.f32 %v2345, %v2346
    %v2348 = vsel %vm166, %v2338, 0.0
    %v2349 = vadd.f32 %v2347, %v2348
    %2350 = vadd.xlane.f32.xlu0 %v2349
    %v2351 = vpop.xlane.xlu0 %2350
    %v2352 = vmul.f32 %v2351, 0.001953125
    %v2353 = vld [vmem:[#allocation16] sm:$0xf]
    %v2354 = vadd.f32 %v2352, 1e-05
    %v2355 = vrsqrt.pop %v2354
    %v2356 = vmul.f32 %v2353, %v2355
    %2358 = vset.pattern.permute.xlu0 0
    %2359 = vperm.xlu0 %2358, %v2356
    %v2360 = vpop.permute.xlu0 %2359
    %v2362 = vmul.f32 %v2321, %v2360
    %v2363 = vmul.f32 %v2322, %v2360
    %v2364 = vmul.f32 %v2323, %v2360
    %v2365 = vmul.f32 %v2324, %v2360
    %v2366 = vmul.f32 %v2325, %v2360
    %v2367 = vmul.f32 %v2326, %v2360
    %v2368 = vld [vmem:[#allocation18] sm:$0xf]
    %2370 = vset.pattern.permute.xlu0 0
    %2371 = vperm.xlu0 %2370, %v2368
    %v2372 = vpop.permute.xlu0 %2371
    %v2374 = vadd.f32 %v2362, %v2372
    %v2375 = vadd.f32 %v2363, %v2372
    %v2376 = vadd.f32 %v2364, %v2372
    %v2377 = vadd.f32 %v2365, %v2372
    %v2378 = vadd.f32 %v2366, %v2372
    %v2379 = vadd.f32 %v2367, %v2372
    %v2380 = vmax.f32 %v2374, 0.0
    %v2381 = vmax.f32 %v2375, 0.0
    %v2382 = vmax.f32 %v2376, 0.0
    %v2383 = vmax.f32 %v2377, 0.0
    %v2384 = vmax.f32 %v2378, 0.0
    %v2385 = vmax.f32 %v2379, 0.0
    %v2392 = vcombine.low %v2380, %v2381
    %v2393 = vcombine.low %v2382, %v2383
    %v2394 = vcombine.low %v2384, %v2385
    %2398 = vst [vmem:[#allocation19] sm:$0xff] %v2392
    %2399 = vst [vmem:[#allocation19 + $0x8] sm:$0xff] %v2393
    %vm2400 = vmor %vm206, %vm1315
    %2401 = vst.msk [vmem:[#allocation19 + $0x10] sm:$0xff] %vm2400, %v2394
    // Predicated region
    $region74: #{tpu_custom_call.1} parent=1 // pred_check
      _
    $region75: #{tpu_custom_call.1} parent=1 // pred_check_branch
      %2403 = sbr.rel (0) target = $region77
    $region76: #{tpu_custom_call.1} parent=1 // pred_region
      %s2405 = ssub.s32 384, 384
      %2406 = vsyncadd [#allocation6], %s2405
      %s2408 = sshll.u32 [#allocation19], 4
      %s2409 = int_to_ptr.vmem [resolvable:$true] %s2408
      %2411 = dma.vmem_to_hbm [thread:$0]  %s2409, 384, %s9, [#allocation6]
    $region77: #{tpu_custom_call.1} parent=1 // pred_fallthru
      _
    // Predicated region
    $region78: #{tpu_custom_call.1} parent=1 // pred_check
      _
    $region79: #{tpu_custom_call.1} parent=1 // pred_check_branch
      %2413 = sbr.rel (0) target = $region81
    $region80: #{tpu_custom_call.1} parent=1 // pred_region
      %2414 = dma.done [#allocation6], 384
    $region81: #{tpu_custom_call.1} parent=1 // pred_fallthru
      _
    %2415 = vsyncpa [#allocation5], 1
    %2416 = vsyncpa [#allocation8], 1
    %2417 = vsyncpa [#allocation11], 1
    %2418 = vsyncpa [#allocation14], 1
    %2419 = vsyncpa [#allocation17], 1
    %2420 = vsyncpa [#allocation6], 1

</llo_original>
